<compile_context>
chip_gen: v7x
topology: tpu7x:2x2x1
jax: 0.10.0
libtpu: 0.0.40
codegen_flags: <defaults>
</compile_context>

<pallas_src>
import functools
import math

import jax
import jax.numpy as jnp
from jax.experimental import pallas as pl
from jax.experimental.pallas import tpu as pltpu  # noqa: F401  (kept for TPU-specific params when tiling at real sizes)


CONFIG = dict(
    vocab_size=64,
    hidden_size=32,
    num_hidden_layers=2,
    num_attention_heads=2,
    intermediate_size=64,
    max_position_embeddings=16,
    layer_norm_eps=1e-12,
)


# ----------------------------------------------------------------------------
# In-kernel helpers
# ----------------------------------------------------------------------------
def _layer_norm(x, gamma, beta, eps):
    # x: (N, H) f32; gamma/beta: (1, H) f32
    mu = jnp.mean(x, axis=-1, keepdims=True)
    var = jnp.mean((x - mu) ** 2, axis=-1, keepdims=True)
    return (x - mu) * jax.lax.rsqrt(var + eps) * gamma + beta


# ----------------------------------------------------------------------------
# Fused BERT kernel: emb LN -> L encoder layers -> MLM head + NSP head
# ----------------------------------------------------------------------------
def bert_fused_kernel(
    emb_ref, addmask_ref, emb_g_ref, emb_b_ref,
    wqkv_ref, bqkv_ref, wo_ref, bo_ref,
    ln1_g_ref, ln1_b_ref, w1_ref, b1_ref, w2_ref, b2_ref,
    ln2_g_ref, ln2_b_ref, mlm_w_ref, mlm_b_ref, nsp_w_ref, nsp_b_ref,
    mlm_ref, nsp_ref,
    *, num_layers, num_heads, head_dim, eps,
):
    B, S, H = emb_ref.shape
    BS = B * S

    # Embedding LayerNorm on the whole (B*S, H) slab (fuller sublanes than (1,S,H)).
    x = _layer_norm(emb_ref[...].reshape(BS, H), emb_g_ref[...], emb_b_ref[...], eps)

    # Additive mask broadcast hoisted: one materialization for all layers/heads.
    add_mask = jnp.broadcast_to(addmask_ref[...], (B, S, S))

    for l in range(num_layers):  # static unroll (num_layers=2)
        # ---- fused QKV projection: one (BS, H) @ (H, 3H) matmul, bf16 in / f32 acc
        qkv = jnp.dot(x.astype(jnp.bfloat16), wqkv_ref[l],
                      preferred_element_type=jnp.float32) + bqkv_ref[l]  # (BS, 3H) f32
        qkv_bf = qkv.astype(jnp.bfloat16)  # single bf16 cast per layer; heads slice this

        wo = wo_ref[l]  # (H, H) bf16
        attn = jnp.zeros((BS, H), jnp.float32)
        # TODO(synk): at larger nh/hd relayout heads once (einshape) instead of 16-lane slices.
        for h in range(num_heads):  # static unroll (num_heads=2); each iter batched over B
            lo = h * head_dim
            qh = qkv_bf[:, lo:lo + head_dim].reshape(B, S, head_dim)
            kh = qkv_bf[:, H + lo:H + lo + head_dim].reshape(B, S, head_dim)
            vh = qkv_bf[:, 2 * H + lo:2 * H + lo + head_dim].reshape(B, S, head_dim)

            # scores: contraction on last dims (no explicit .T / XLU transpose).
            # 1/sqrt(head_dim) is already folded into the Q weight columns at init.
            s_h = jnp.einsum('bqd,bkd->bqk', qh, kh,
                             preferred_element_type=jnp.float32) + add_mask
            s_h = s_h - jnp.max(s_h, axis=-1, keepdims=True)
            p = jnp.exp(s_h)
            # divide -> EUP reciprocal + VPU multiply
            p = p * pl.reciprocal(jnp.sum(p, axis=-1, keepdims=True), approx=True)

            ctx = jnp.einsum('bqk,bkd->bqd', p.astype(jnp.bfloat16), vh,
                             preferred_element_type=jnp.float32)  # (B, S, hd)

            # project this head's context through its Wo row-slice and accumulate
            # (equivalent to concat(ctx_heads) @ Wo, without the lane concatenate)
            attn = attn + jnp.dot(ctx.reshape(BS, head_dim).astype(jnp.bfloat16),
                                  wo[lo:lo + head_dim, :],
                                  preferred_element_type=jnp.float32)

        attn = attn + bo_ref[l]
        h1 = _layer_norm(x + attn, ln1_g_ref[l], ln1_b_ref[l], eps)

        # ---- feed-forward
        ff = jnp.dot(h1.astype(jnp.bfloat16), w1_ref[l],
                     preferred_element_type=jnp.float32) + b1_ref[l]
        # TODO(synk): reference BertModel not provided; using tanh-approx GELU activation.
        ff = jax.nn.gelu(ff, approximate=True)
        ff = jnp.dot(ff.astype(jnp.bfloat16), w2_ref[l],
                     preferred_element_type=jnp.float32) + b2_ref[l]
        x = _layer_norm(h1 + ff, ln2_g_ref[l], ln2_b_ref[l], eps)

    x_bf = x.astype(jnp.bfloat16)  # single cast shared by MLM + NSP heads

    # ---- MLM head: (BS, H) @ (H, V_pad) — lane-dense output slab (V padded to 128).
    mlm_ref[...] = jnp.dot(x_bf, mlm_w_ref[...],
                           preferred_element_type=jnp.float32) + mlm_b_ref[...]

    # ---- NSP head on the CLS row, computed in-kernel so the full (B,S,H) hidden
    # state never has to be written back to HBM just to gather one row.
    cls_bf = x_bf.reshape(B, S, H)[:, 0, :]  # (B, H)
    nsp_ref[...] = jnp.dot(cls_bf, nsp_w_ref[...],
                           preferred_element_type=jnp.float32) + nsp_b_ref[...]


def pallas_bert_forward(emb, add_mask, params, cfg):
    B, S, H = emb.shape
    V_pad = params["mlm_w"].shape[1]
    kernel = functools.partial(
        bert_fused_kernel,
        num_layers=cfg["num_hidden_layers"],
        num_heads=cfg["num_attention_heads"],
        head_dim=H // cfg["num_attention_heads"],
        eps=cfg["layer_norm_eps"],
    )
    # No grid: the whole (tiny) workload runs in one kernel invocation with every
    # operand resident in VMEM, eliminating per-grid-step / per-pallas_call overhead.
    return pl.pallas_call(
        kernel,
        out_shape=(
            jax.ShapeDtypeStruct((B * S, V_pad), jnp.float32),  # lane-dense MLM logits
            jax.ShapeDtypeStruct((B, 2), jnp.float32),           # NSP logits
        ),
    )(
        emb, add_mask, params["emb_ln_g"], params["emb_ln_b"],
        params["wqkv"], params["bqkv"], params["wo"], params["bo"],
        params["ln1_g"], params["ln1_b"], params["w1"], params["b1"],
        params["w2"], params["b2"], params["ln2_g"], params["ln2_b"],
        params["mlm_w"], params["mlm_b"], params["nsp_w"], params["nsp_b"],
    )


# ----------------------------------------------------------------------------
# Model: parameter init + forward
# ----------------------------------------------------------------------------
def init_params(key, cfg):
    H = cfg["hidden_size"]
    V = cfg["vocab_size"]
    I = cfg["intermediate_size"]
    P = cfg["max_position_embeddings"]
    L = cfg["num_hidden_layers"]
    nh = cfg["num_attention_heads"]
    hd = H // nh
    scale = 1.0 / math.sqrt(hd)
    V_pad = ((V + 127) // 128) * 128  # lane-dense MLM output

    def nrm(k, shape):
        return (0.02 * jax.random.normal(k, shape)).astype(jnp.float32)

    keys = jax.random.split(key, 4 + L)

    # Per-layer weights stacked along a leading L dim; matmul weights stored bf16
    # (MXU operands), biases / LayerNorm params kept f32.
    wqkv, bqkv, wo, bo = [], [], [], []
    ln1_g, ln1_b, w1, b1, w2, b2, ln2_g, ln2_b = [], [], [], [], [], [], [], []
    for l in range(L):
        lk = jax.random.split(keys[4 + l], 6)
        wq, wk, wv = nrm(lk[0], (H, H)), nrm(lk[1], (H, H)), nrm(lk[2], (H, H))
        # Fold the 1/sqrt(head_dim) softmax scale into the Q columns (Q bias is zero;
        # a nonzero Q bias would have to be scaled identically).
        wqkv.append(jnp.concatenate([wq * scale, wk, wv], axis=1))  # (H, 3H)
        bqkv.append(jnp.zeros((1, 3 * H), jnp.float32))
        wo.append(nrm(lk[3], (H, H)))
        bo.append(jnp.zeros((1, H), jnp.float32))
        ln1_g.append(jnp.ones((1, H), jnp.float32))
        ln1_b.append(jnp.zeros((1, H), jnp.float32))
        w1.append(nrm(lk[4], (H, I)))
        b1.append(jnp.zeros((1, I), jnp.float32))
        w2.append(nrm(lk[5], (I, H)))
        b2.append(jnp.zeros((1, H), jnp.float32))
        ln2_g.append(jnp.ones((1, H), jnp.float32))
        ln2_b.append(jnp.zeros((1, H), jnp.float32))

    # MLM decoder padded to a 128-lane-multiple vocab so in-kernel stores are unmasked.
    mlm_w = jnp.pad(nrm(keys[2], (H, V)), ((0, 0), (0, V_pad - V)))

    params = {
        "word_emb": nrm(keys[0], (V, H)),
        "pos_emb": nrm(keys[1], (P, H)),
        "emb_ln_g": jnp.ones((1, H), jnp.float32),
        "emb_ln_b": jnp.zeros((1, H), jnp.float32),
        "wqkv": jnp.stack(wqkv).astype(jnp.bfloat16),    # (L, H, 3H), Q scaled
        "bqkv": jnp.stack(bqkv),                         # (L, 1, 3H)
        "wo": jnp.stack(wo).astype(jnp.bfloat16),        # (L, H, H)
        "bo": jnp.stack(bo),
        "ln1_g": jnp.stack(ln1_g), "ln1_b": jnp.stack(ln1_b),
        "w1": jnp.stack(w1).astype(jnp.bfloat16),        # (L, H, I)
        "b1": jnp.stack(b1),
        "w2": jnp.stack(w2).astype(jnp.bfloat16),        # (L, I, H)
        "b2": jnp.stack(b2),
        "ln2_g": jnp.stack(ln2_g), "ln2_b": jnp.stack(ln2_b),
        "mlm_w": mlm_w.astype(jnp.bfloat16),             # (H, V_pad)
        "mlm_b": jnp.zeros((1, V_pad), jnp.float32),
        "nsp_w": nrm(keys[3], (H, 2)).astype(jnp.bfloat16),
        "nsp_b": jnp.zeros((1, 2), jnp.float32),
    }
    return params


def bert_for_pretraining(params, input_ids, attention_mask, cfg):
    B, S = input_ids.shape
    V = cfg["vocab_size"]

    if attention_mask is None:
        attention_mask = jnp.ones((B, S), jnp.float32)
    # Additive mask precomputed once, reused by every layer inside the kernel.
    add_mask = ((1.0 - attention_mask.astype(jnp.float32)) * (-1e9)).reshape(B, 1, S)

    # Embedding gather is glue (plain JAX); LayerNorm onward runs in the fused kernel.
    # TODO(synk): token_type embeddings omitted — forward() never passes token_type_ids.
    emb = params["word_emb"][input_ids] + params["pos_emb"][None, :S, :]

    mlm_padded, nsp_scores = pallas_bert_forward(
        emb.astype(jnp.float32), add_mask, params, cfg)

    # Drop the lane padding (V -> V_pad inside the kernel keeps stores unmasked).
    mlm_scores = mlm_padded.reshape(B, S, -1)[..., :V]
    return mlm_scores, nsp_scores


# ----------------------------------------------------------------------------
# Main
# ----------------------------------------------------------------------------
if __name__ == "__main__":
    cfg = CONFIG
    B, S = 2, 8

    params = init_params(jax.random.PRNGKey(0), cfg)

    ids_key = jax.random.PRNGKey(1)
    input_ids = jax.random.randint(ids_key, (B, S), 0, cfg["vocab_size"], dtype=jnp.int32)
    attention_mask = jnp.ones((B, S), jnp.float32).at[1, S - 2:].set(0.0)

    mlm_scores, nsp_scores = bert_for_pretraining(params, input_ids, attention_mask, cfg)
    jax.block_until_ready((mlm_scores, nsp_scores))

    assert mlm_scores.shape == (B, S, cfg["vocab_size"])
    assert nsp_scores.shape == (B, 2)
    assert bool(jnp.all(jnp.isfinite(mlm_scores))) and bool(jnp.all(jnp.isfinite(nsp_scores)))
    print("KERNEL_OK")
</pallas_src>

<mosaic_0001>
module attributes {stable_mosaic.version = 11 : i64} {
  func.func @bert_fused_kernel(%arg0: memref<2x8x32xf32, #tpu.memory_space<vmem>>, %arg1: memref<2x1x8xf32, #tpu.memory_space<vmem>>, %arg2: memref<1x32xf32, #tpu.memory_space<vmem>>, %arg3: memref<1x32xf32, #tpu.memory_space<vmem>>, %arg4: memref<2x32x96xbf16, #tpu.memory_space<vmem>>, %arg5: memref<2x1x96xf32, #tpu.memory_space<vmem>>, %arg6: memref<2x32x32xbf16, #tpu.memory_space<vmem>>, %arg7: memref<2x1x32xf32, #tpu.memory_space<vmem>>, %arg8: memref<2x1x32xf32, #tpu.memory_space<vmem>>, %arg9: memref<2x1x32xf32, #tpu.memory_space<vmem>>, %arg10: memref<2x32x64xbf16, #tpu.memory_space<vmem>>, %arg11: memref<2x1x64xf32, #tpu.memory_space<vmem>>, %arg12: memref<2x64x32xbf16, #tpu.memory_space<vmem>>, %arg13: memref<2x1x32xf32, #tpu.memory_space<vmem>>, %arg14: memref<2x1x32xf32, #tpu.memory_space<vmem>>, %arg15: memref<2x1x32xf32, #tpu.memory_space<vmem>>, %arg16: memref<32x128xbf16, #tpu.memory_space<vmem>>, %arg17: memref<1x128xf32, #tpu.memory_space<vmem>>, %arg18: memref<32x2xbf16, #tpu.memory_space<vmem>>, %arg19: memref<1x2xf32, #tpu.memory_space<vmem>>, %arg20: memref<16x128xf32, #tpu.memory_space<vmem>>, %arg21: memref<2x2xf32, #tpu.memory_space<vmem>>) attributes {dimension_semantics = [], scalar_prefetch = 0 : i64, scratch_operands = 0 : i64, tpu.core_type = #tpu.core_type<tc>} {
    %c0 = arith.constant 0 : index
    %c0_0 = arith.constant 0 : index
    %c0_1 = arith.constant 0 : index
    %0 = vector.load %arg0[%c0, %c0_0, %c0_1] : memref<2x8x32xf32, #tpu.memory_space<vmem>>, vector<2x8x32xf32>
    %1 = vector.shape_cast %0 : vector<2x8x32xf32> to vector<16x32xf32>
    %c0_2 = arith.constant 0 : index
    %c0_3 = arith.constant 0 : index
    %2 = vector.load %arg2[%c0_2, %c0_3] : memref<1x32xf32, #tpu.memory_space<vmem>>, vector<1x32xf32>
    %c0_4 = arith.constant 0 : index
    %c0_5 = arith.constant 0 : index
    %3 = vector.load %arg3[%c0_4, %c0_5] : memref<1x32xf32, #tpu.memory_space<vmem>>, vector<1x32xf32>
    %cst = arith.constant dense<0.000000e+00> : vector<16xf32>
    %4 = vector.multi_reduction <add>, %1, %cst [1] : vector<16x32xf32> to vector<16xf32>
    %5 = vector.shape_cast %4 : vector<16xf32> to vector<16x1xf32>
    %cst_6 = arith.constant 3.200000e+01 : f32
    %6 = vector.broadcast %cst_6 : f32 to vector<16x1xf32>
    %7 = arith.divf %5, %6 : vector<16x1xf32>
    %8 = vector.broadcast %7 : vector<16x1xf32> to vector<16x32xf32>
    %9 = arith.subf %1, %8 : vector<16x32xf32>
    %10 = arith.mulf %9, %9 : vector<16x32xf32>
    %cst_7 = arith.constant dense<0.000000e+00> : vector<16xf32>
    %11 = vector.multi_reduction <add>, %10, %cst_7 [1] : vector<16x32xf32> to vector<16xf32>
    %12 = vector.shape_cast %11 : vector<16xf32> to vector<16x1xf32>
    %cst_8 = arith.constant 3.200000e+01 : f32
    %13 = vector.broadcast %cst_8 : f32 to vector<16x1xf32>
    %14 = arith.divf %12, %13 : vector<16x1xf32>
    %15 = vector.broadcast %7 : vector<16x1xf32> to vector<16x32xf32>
    %16 = arith.subf %1, %15 : vector<16x32xf32>
    %cst_9 = arith.constant 9.99999996E-13 : f32
    %17 = vector.broadcast %cst_9 : f32 to vector<16x1xf32>
    %18 = arith.addf %14, %17 : vector<16x1xf32>
    %19 = math.rsqrt %18 : vector<16x1xf32>
    %20 = vector.broadcast %19 : vector<16x1xf32> to vector<16x32xf32>
    %21 = arith.mulf %16, %20 : vector<16x32xf32>
    %22 = vector.broadcast %2 : vector<1x32xf32> to vector<16x32xf32>
    %23 = arith.mulf %21, %22 : vector<16x32xf32>
    %24 = vector.broadcast %3 : vector<1x32xf32> to vector<16x32xf32>
    %25 = arith.addf %23, %24 : vector<16x32xf32>
    %c0_10 = arith.constant 0 : index
    %c0_11 = arith.constant 0 : index
    %c0_12 = arith.constant 0 : index
    %26 = vector.load %arg1[%c0_10, %c0_11, %c0_12] : memref<2x1x8xf32, #tpu.memory_space<vmem>>, vector<2x1x8xf32>
    %27 = vector.shape_cast %26 : vector<2x1x8xf32> to vector<2x1x8xf32>
    %28 = vector.broadcast %27 : vector<2x1x8xf32> to vector<2x8x8xf32>
    %29 = arith.truncf %25 : vector<16x32xf32> to vector<16x32xbf16>
    %c0_13 = arith.constant 0 : index
    %c0_14 = arith.constant 0 : index
    %c0_15 = arith.constant 0 : index
    %30 = vector.load %arg4[%c0_13, %c0_14, %c0_15] : memref<2x32x96xbf16, #tpu.memory_space<vmem>>, vector<1x32x96xbf16>
    %31 = vector.shape_cast %30 : vector<1x32x96xbf16> to vector<32x96xbf16>
    %cst_16 = arith.constant dense<0.000000e+00> : vector<16x96xf32>
    %32 = tpu.matmul %29, %31, %cst_16 {dimension_numbers = #tpu.dot_dimension_numbers<[1], [0], [0], [1], [0, 0, 1, 1], [], []>} : vector<16x32xbf16>, vector<32x96xbf16>, vector<16x96xf32> -> vector<16x96xf32>
    %c0_17 = arith.constant 0 : index
    %c0_18 = arith.constant 0 : index
    %c0_19 = arith.constant 0 : index
    %33 = vector.load %arg5[%c0_17, %c0_18, %c0_19] : memref<2x1x96xf32, #tpu.memory_space<vmem>>, vector<1x1x96xf32>
    %34 = vector.shape_cast %33 : vector<1x1x96xf32> to vector<1x96xf32>
    %35 = vector.broadcast %34 : vector<1x96xf32> to vector<16x96xf32>
    %36 = arith.addf %32, %35 : vector<16x96xf32>
    %37 = arith.truncf %36 : vector<16x96xf32> to vector<16x96xbf16>
    %c0_20 = arith.constant 0 : index
    %c0_21 = arith.constant 0 : index
    %c0_22 = arith.constant 0 : index
    %38 = vector.load %arg6[%c0_20, %c0_21, %c0_22] : memref<2x32x32xbf16, #tpu.memory_space<vmem>>, vector<1x32x32xbf16>
    %39 = vector.shape_cast %38 : vector<1x32x32xbf16> to vector<32x32xbf16>
    %cst_23 = arith.constant 0.000000e+00 : f32
    %40 = vector.broadcast %cst_23 : f32 to vector<16x32xf32>
    %41 = vector.extract_strided_slice %37 {offsets = [0, 0], sizes = [16, 16], strides = [1, 1]} : vector<16x96xbf16> to vector<16x16xbf16>
    %42 = vector.shape_cast %41 : vector<16x16xbf16> to vector<2x8x16xbf16>
    %43 = vector.extract_strided_slice %37 {offsets = [0, 32], sizes = [16, 16], strides = [1, 1]} : vector<16x96xbf16> to vector<16x16xbf16>
    %44 = vector.shape_cast %43 : vector<16x16xbf16> to vector<2x8x16xbf16>
    %45 = vector.extract_strided_slice %37 {offsets = [0, 64], sizes = [16, 16], strides = [1, 1]} : vector<16x96xbf16> to vector<16x16xbf16>
    %46 = vector.shape_cast %45 : vector<16x16xbf16> to vector<2x8x16xbf16>
    "tpu.trace_start"() <{level = 10 : i32, message = "bqd,bkd->bqk"}> : () -> ()
    %cst_24 = arith.constant dense<0.000000e+00> : vector<2x8x8xf32>
    %47 = tpu.matmul %42, %44, %cst_24 {dimension_numbers = #tpu.dot_dimension_numbers<[2], [2], [1], [1], [0, 0, 0, 1, 1, 1], [0], [0]>} : vector<2x8x16xbf16>, vector<2x8x16xbf16>, vector<2x8x8xf32> -> vector<2x8x8xf32>
    "tpu.trace_stop"() : () -> ()
    %48 = arith.addf %47, %28 : vector<2x8x8xf32>
    %cst_25 = arith.constant dense<0xFF800000> : vector<2x8xf32>
    %49 = vector.multi_reduction <maximumf>, %48, %cst_25 [2] : vector<2x8x8xf32> to vector<2x8xf32>
    %50 = vector.shape_cast %49 : vector<2x8xf32> to vector<2x8x1xf32>
    %51 = vector.broadcast %50 : vector<2x8x1xf32> to vector<2x8x8xf32>
    %52 = arith.subf %48, %51 : vector<2x8x8xf32>
    %53 = math.exp %52 : vector<2x8x8xf32>
    %cst_26 = arith.constant dense<0.000000e+00> : vector<2x8xf32>
    %54 = vector.multi_reduction <add>, %53, %cst_26 [2] : vector<2x8x8xf32> to vector<2x8xf32>
    %55 = vector.shape_cast %54 : vector<2x8xf32> to vector<2x8x1xf32>
    %56 = tpu.reciprocal %55 {approx = true} : vector<2x8x1xf32> -> vector<2x8x1xf32>
    %57 = vector.broadcast %56 : vector<2x8x1xf32> to vector<2x8x8xf32>
    %58 = arith.mulf %53, %57 : vector<2x8x8xf32>
    %59 = arith.truncf %58 : vector<2x8x8xf32> to vector<2x8x8xbf16>
    "tpu.trace_start"() <{level = 10 : i32, message = "bqk,bkd->bqd"}> : () -> ()
    %cst_27 = arith.constant dense<0.000000e+00> : vector<2x8x16xf32>
    %60 = tpu.matmul %59, %46, %cst_27 {dimension_numbers = #tpu.dot_dimension_numbers<[2], [1], [1], [2], [0, 0, 0, 1, 1, 2], [0], [0]>} : vector<2x8x8xbf16>, vector<2x8x16xbf16>, vector<2x8x16xf32> -> vector<2x8x16xf32>
    "tpu.trace_stop"() : () -> ()
    %61 = vector.shape_cast %60 : vector<2x8x16xf32> to vector<16x16xf32>
    %62 = arith.truncf %61 : vector<16x16xf32> to vector<16x16xbf16>
    %63 = vector.extract_strided_slice %39 {offsets = [0, 0], sizes = [16, 32], strides = [1, 1]} : vector<32x32xbf16> to vector<16x32xbf16>
    %cst_28 = arith.constant dense<0.000000e+00> : vector<16x32xf32>
    %64 = tpu.matmul %62, %63, %cst_28 {dimension_numbers = #tpu.dot_dimension_numbers<[1], [0], [0], [1], [0, 0, 1, 1], [], []>} : vector<16x16xbf16>, vector<16x32xbf16>, vector<16x32xf32> -> vector<16x32xf32>
    %65 = arith.addf %40, %64 : vector<16x32xf32>
    %66 = vector.extract_strided_slice %37 {offsets = [0, 16], sizes = [16, 16], strides = [1, 1]} : vector<16x96xbf16> to vector<16x16xbf16>
    %67 = vector.shape_cast %66 : vector<16x16xbf16> to vector<2x8x16xbf16>
    %68 = vector.extract_strided_slice %37 {offsets = [0, 48], sizes = [16, 16], strides = [1, 1]} : vector<16x96xbf16> to vector<16x16xbf16>
    %69 = vector.shape_cast %68 : vector<16x16xbf16> to vector<2x8x16xbf16>
    %70 = vector.extract_strided_slice %37 {offsets = [0, 80], sizes = [16, 16], strides = [1, 1]} : vector<16x96xbf16> to vector<16x16xbf16>
    %71 = vector.shape_cast %70 : vector<16x16xbf16> to vector<2x8x16xbf16>
    "tpu.trace_start"() <{level = 10 : i32, message = "bqd,bkd->bqk"}> : () -> ()
    %cst_29 = arith.constant dense<0.000000e+00> : vector<2x8x8xf32>
    %72 = tpu.matmul %67, %69, %cst_29 {dimension_numbers = #tpu.dot_dimension_numbers<[2], [2], [1], [1], [0, 0, 0, 1, 1, 1], [0], [0]>} : vector<2x8x16xbf16>, vector<2x8x16xbf16>, vector<2x8x8xf32> -> vector<2x8x8xf32>
    "tpu.trace_stop"() : () -> ()
    %73 = arith.addf %72, %28 : vector<2x8x8xf32>
    %cst_30 = arith.constant dense<0xFF800000> : vector<2x8xf32>
    %74 = vector.multi_reduction <maximumf>, %73, %cst_30 [2] : vector<2x8x8xf32> to vector<2x8xf32>
    %75 = vector.shape_cast %74 : vector<2x8xf32> to vector<2x8x1xf32>
    %76 = vector.broadcast %75 : vector<2x8x1xf32> to vector<2x8x8xf32>
    %77 = arith.subf %73, %76 : vector<2x8x8xf32>
    %78 = math.exp %77 : vector<2x8x8xf32>
    %cst_31 = arith.constant dense<0.000000e+00> : vector<2x8xf32>
    %79 = vector.multi_reduction <add>, %78, %cst_31 [2] : vector<2x8x8xf32> to vector<2x8xf32>
    %80 = vector.shape_cast %79 : vector<2x8xf32> to vector<2x8x1xf32>
    %81 = tpu.reciprocal %80 {approx = true} : vector<2x8x1xf32> -> vector<2x8x1xf32>
    %82 = vector.broadcast %81 : vector<2x8x1xf32> to vector<2x8x8xf32>
    %83 = arith.mulf %78, %82 : vector<2x8x8xf32>
    %84 = arith.truncf %83 : vector<2x8x8xf32> to vector<2x8x8xbf16>
    "tpu.trace_start"() <{level = 10 : i32, message = "bqk,bkd->bqd"}> : () -> ()
    %cst_32 = arith.constant dense<0.000000e+00> : vector<2x8x16xf32>
    %85 = tpu.matmul %84, %71, %cst_32 {dimension_numbers = #tpu.dot_dimension_numbers<[2], [1], [1], [2], [0, 0, 0, 1, 1, 2], [0], [0]>} : vector<2x8x8xbf16>, vector<2x8x16xbf16>, vector<2x8x16xf32> -> vector<2x8x16xf32>
    "tpu.trace_stop"() : () -> ()
    %86 = vector.shape_cast %85 : vector<2x8x16xf32> to vector<16x16xf32>
    %87 = arith.truncf %86 : vector<16x16xf32> to vector<16x16xbf16>
    %88 = vector.extract_strided_slice %39 {offsets = [16, 0], sizes = [16, 32], strides = [1, 1]} : vector<32x32xbf16> to vector<16x32xbf16>
    %cst_33 = arith.constant dense<0.000000e+00> : vector<16x32xf32>
    %89 = tpu.matmul %87, %88, %cst_33 {dimension_numbers = #tpu.dot_dimension_numbers<[1], [0], [0], [1], [0, 0, 1, 1], [], []>} : vector<16x16xbf16>, vector<16x32xbf16>, vector<16x32xf32> -> vector<16x32xf32>
    %90 = arith.addf %65, %89 : vector<16x32xf32>
    %c0_34 = arith.constant 0 : index
    %c0_35 = arith.constant 0 : index
    %c0_36 = arith.constant 0 : index
    %91 = vector.load %arg7[%c0_34, %c0_35, %c0_36] : memref<2x1x32xf32, #tpu.memory_space<vmem>>, vector<1x1x32xf32>
    %92 = vector.shape_cast %91 : vector<1x1x32xf32> to vector<1x32xf32>
    %93 = vector.broadcast %92 : vector<1x32xf32> to vector<16x32xf32>
    %94 = arith.addf %90, %93 : vector<16x32xf32>
    %95 = arith.addf %25, %94 : vector<16x32xf32>
    %c0_37 = arith.constant 0 : index
    %c0_38 = arith.constant 0 : index
    %c0_39 = arith.constant 0 : index
    %96 = vector.load %arg8[%c0_37, %c0_38, %c0_39] : memref<2x1x32xf32, #tpu.memory_space<vmem>>, vector<1x1x32xf32>
    %97 = vector.shape_cast %96 : vector<1x1x32xf32> to vector<1x32xf32>
    %c0_40 = arith.constant 0 : index
    %c0_41 = arith.constant 0 : index
    %c0_42 = arith.constant 0 : index
    %98 = vector.load %arg9[%c0_40, %c0_41, %c0_42] : memref<2x1x32xf32, #tpu.memory_space<vmem>>, vector<1x1x32xf32>
    %99 = vector.shape_cast %98 : vector<1x1x32xf32> to vector<1x32xf32>
    %cst_43 = arith.constant dense<0.000000e+00> : vector<16xf32>
    %100 = vector.multi_reduction <add>, %95, %cst_43 [1] : vector<16x32xf32> to vector<16xf32>
    %101 = vector.shape_cast %100 : vector<16xf32> to vector<16x1xf32>
    %cst_44 = arith.constant 3.200000e+01 : f32
    %102 = vector.broadcast %cst_44 : f32 to vector<16x1xf32>
    %103 = arith.divf %101, %102 : vector<16x1xf32>
    %104 = vector.broadcast %103 : vector<16x1xf32> to vector<16x32xf32>
    %105 = arith.subf %95, %104 : vector<16x32xf32>
    %106 = arith.mulf %105, %105 : vector<16x32xf32>
    %cst_45 = arith.constant dense<0.000000e+00> : vector<16xf32>
    %107 = vector.multi_reduction <add>, %106, %cst_45 [1] : vector<16x32xf32> to vector<16xf32>
    %108 = vector.shape_cast %107 : vector<16xf32> to vector<16x1xf32>
    %cst_46 = arith.constant 3.200000e+01 : f32
    %109 = vector.broadcast %cst_46 : f32 to vector<16x1xf32>
    %110 = arith.divf %108, %109 : vector<16x1xf32>
    %111 = vector.broadcast %103 : vector<16x1xf32> to vector<16x32xf32>
    %112 = arith.subf %95, %111 : vector<16x32xf32>
    %cst_47 = arith.constant 9.99999996E-13 : f32
    %113 = vector.broadcast %cst_47 : f32 to vector<16x1xf32>
    %114 = arith.addf %110, %113 : vector<16x1xf32>
    %115 = math.rsqrt %114 : vector<16x1xf32>
    %116 = vector.broadcast %115 : vector<16x1xf32> to vector<16x32xf32>
    %117 = arith.mulf %112, %116 : vector<16x32xf32>
    %118 = vector.broadcast %97 : vector<1x32xf32> to vector<16x32xf32>
    %119 = arith.mulf %117, %118 : vector<16x32xf32>
    %120 = vector.broadcast %99 : vector<1x32xf32> to vector<16x32xf32>
    %121 = arith.addf %119, %120 : vector<16x32xf32>
    %122 = arith.truncf %121 : vector<16x32xf32> to vector<16x32xbf16>
    %c0_48 = arith.constant 0 : index
    %c0_49 = arith.constant 0 : index
    %c0_50 = arith.constant 0 : index
    %123 = vector.load %arg10[%c0_48, %c0_49, %c0_50] : memref<2x32x64xbf16, #tpu.memory_space<vmem>>, vector<1x32x64xbf16>
    %124 = vector.shape_cast %123 : vector<1x32x64xbf16> to vector<32x64xbf16>
    %cst_51 = arith.constant dense<0.000000e+00> : vector<16x64xf32>
    %125 = tpu.matmul %122, %124, %cst_51 {dimension_numbers = #tpu.dot_dimension_numbers<[1], [0], [0], [1], [0, 0, 1, 1], [], []>} : vector<16x32xbf16>, vector<32x64xbf16>, vector<16x64xf32> -> vector<16x64xf32>
    %c0_52 = arith.constant 0 : index
    %c0_53 = arith.constant 0 : index
    %c0_54 = arith.constant 0 : index
    %126 = vector.load %arg11[%c0_52, %c0_53, %c0_54] : memref<2x1x64xf32, #tpu.memory_space<vmem>>, vector<1x1x64xf32>
    %127 = vector.shape_cast %126 : vector<1x1x64xf32> to vector<1x64xf32>
    %128 = vector.broadcast %127 : vector<1x64xf32> to vector<16x64xf32>
    %129 = arith.addf %125, %128 : vector<16x64xf32>
    %130 = arith.mulf %129, %129 : vector<16x64xf32>
    %131 = arith.mulf %129, %130 : vector<16x64xf32>
    %cst_55 = arith.constant 4.471500e-02 : f32
    %132 = vector.broadcast %cst_55 : f32 to vector<16x64xf32>
    %133 = arith.mulf %132, %131 : vector<16x64xf32>
    %134 = arith.addf %129, %133 : vector<16x64xf32>
    %cst_56 = arith.constant 0.797884583 : f32
    %135 = vector.broadcast %cst_56 : f32 to vector<16x64xf32>
    %136 = arith.mulf %135, %134 : vector<16x64xf32>
    %137 = math.tanh %136 : vector<16x64xf32>
    %cst_57 = arith.constant 1.000000e+00 : f32
    %138 = vector.broadcast %cst_57 : f32 to vector<16x64xf32>
    %139 = arith.addf %138, %137 : vector<16x64xf32>
    %cst_58 = arith.constant 5.000000e-01 : f32
    %140 = vector.broadcast %cst_58 : f32 to vector<16x64xf32>
    %141 = arith.mulf %140, %139 : vector<16x64xf32>
    %142 = arith.mulf %129, %141 : vector<16x64xf32>
    %143 = arith.truncf %142 : vector<16x64xf32> to vector<16x64xbf16>
    %c0_59 = arith.constant 0 : index
    %c0_60 = arith.constant 0 : index
    %c0_61 = arith.constant 0 : index
    %144 = vector.load %arg12[%c0_59, %c0_60, %c0_61] : memref<2x64x32xbf16, #tpu.memory_space<vmem>>, vector<1x64x32xbf16>
    %145 = vector.shape_cast %144 : vector<1x64x32xbf16> to vector<64x32xbf16>
    %cst_62 = arith.constant dense<0.000000e+00> : vector<16x32xf32>
    %146 = tpu.matmul %143, %145, %cst_62 {dimension_numbers = #tpu.dot_dimension_numbers<[1], [0], [0], [1], [0, 0, 1, 1], [], []>} : vector<16x64xbf16>, vector<64x32xbf16>, vector<16x32xf32> -> vector<16x32xf32>
    %c0_63 = arith.constant 0 : index
    %c0_64 = arith.constant 0 : index
    %c0_65 = arith.constant 0 : index
    %147 = vector.load %arg13[%c0_63, %c0_64, %c0_65] : memref<2x1x32xf32, #tpu.memory_space<vmem>>, vector<1x1x32xf32>
    %148 = vector.shape_cast %147 : vector<1x1x32xf32> to vector<1x32xf32>
    %149 = vector.broadcast %148 : vector<1x32xf32> to vector<16x32xf32>
    %150 = arith.addf %146, %149 : vector<16x32xf32>
    %151 = arith.addf %121, %150 : vector<16x32xf32>
    %c0_66 = arith.constant 0 : index
    %c0_67 = arith.constant 0 : index
    %c0_68 = arith.constant 0 : index
    %152 = vector.load %arg14[%c0_66, %c0_67, %c0_68] : memref<2x1x32xf32, #tpu.memory_space<vmem>>, vector<1x1x32xf32>
    %153 = vector.shape_cast %152 : vector<1x1x32xf32> to vector<1x32xf32>
    %c0_69 = arith.constant 0 : index
    %c0_70 = arith.constant 0 : index
    %c0_71 = arith.constant 0 : index
    %154 = vector.load %arg15[%c0_69, %c0_70, %c0_71] : memref<2x1x32xf32, #tpu.memory_space<vmem>>, vector<1x1x32xf32>
    %155 = vector.shape_cast %154 : vector<1x1x32xf32> to vector<1x32xf32>
    %cst_72 = arith.constant dense<0.000000e+00> : vector<16xf32>
    %156 = vector.multi_reduction <add>, %151, %cst_72 [1] : vector<16x32xf32> to vector<16xf32>
    %157 = vector.shape_cast %156 : vector<16xf32> to vector<16x1xf32>
    %cst_73 = arith.constant 3.200000e+01 : f32
    %158 = vector.broadcast %cst_73 : f32 to vector<16x1xf32>
    %159 = arith.divf %157, %158 : vector<16x1xf32>
    %160 = vector.broadcast %159 : vector<16x1xf32> to vector<16x32xf32>
    %161 = arith.subf %151, %160 : vector<16x32xf32>
    %162 = arith.mulf %161, %161 : vector<16x32xf32>
    %cst_74 = arith.constant dense<0.000000e+00> : vector<16xf32>
    %163 = vector.multi_reduction <add>, %162, %cst_74 [1] : vector<16x32xf32> to vector<16xf32>
    %164 = vector.shape_cast %163 : vector<16xf32> to vector<16x1xf32>
    %cst_75 = arith.constant 3.200000e+01 : f32
    %165 = vector.broadcast %cst_75 : f32 to vector<16x1xf32>
    %166 = arith.divf %164, %165 : vector<16x1xf32>
    %167 = vector.broadcast %159 : vector<16x1xf32> to vector<16x32xf32>
    %168 = arith.subf %151, %167 : vector<16x32xf32>
    %cst_76 = arith.constant 9.99999996E-13 : f32
    %169 = vector.broadcast %cst_76 : f32 to vector<16x1xf32>
    %170 = arith.addf %166, %169 : vector<16x1xf32>
    %171 = math.rsqrt %170 : vector<16x1xf32>
    %172 = vector.broadcast %171 : vector<16x1xf32> to vector<16x32xf32>
    %173 = arith.mulf %168, %172 : vector<16x32xf32>
    %174 = vector.broadcast %153 : vector<1x32xf32> to vector<16x32xf32>
    %175 = arith.mulf %173, %174 : vector<16x32xf32>
    %176 = vector.broadcast %155 : vector<1x32xf32> to vector<16x32xf32>
    %177 = arith.addf %175, %176 : vector<16x32xf32>
    %178 = arith.truncf %177 : vector<16x32xf32> to vector<16x32xbf16>
    %c1 = arith.constant 1 : index
    %c0_77 = arith.constant 0 : index
    %c0_78 = arith.constant 0 : index
    %179 = vector.load %arg4[%c1, %c0_77, %c0_78] : memref<2x32x96xbf16, #tpu.memory_space<vmem>>, vector<1x32x96xbf16>
    %180 = vector.shape_cast %179 : vector<1x32x96xbf16> to vector<32x96xbf16>
    %cst_79 = arith.constant dense<0.000000e+00> : vector<16x96xf32>
    %181 = tpu.matmul %178, %180, %cst_79 {dimension_numbers = #tpu.dot_dimension_numbers<[1], [0], [0], [1], [0, 0, 1, 1], [], []>} : vector<16x32xbf16>, vector<32x96xbf16>, vector<16x96xf32> -> vector<16x96xf32>
    %c1_80 = arith.constant 1 : index
    %c0_81 = arith.constant 0 : index
    %c0_82 = arith.constant 0 : index
    %182 = vector.load %arg5[%c1_80, %c0_81, %c0_82] : memref<2x1x96xf32, #tpu.memory_space<vmem>>, vector<1x1x96xf32>
    %183 = vector.shape_cast %182 : vector<1x1x96xf32> to vector<1x96xf32>
    %184 = vector.broadcast %183 : vector<1x96xf32> to vector<16x96xf32>
    %185 = arith.addf %181, %184 : vector<16x96xf32>
    %186 = arith.truncf %185 : vector<16x96xf32> to vector<16x96xbf16>
    %c1_83 = arith.constant 1 : index
    %c0_84 = arith.constant 0 : index
    %c0_85 = arith.constant 0 : index
    %187 = vector.load %arg6[%c1_83, %c0_84, %c0_85] : memref<2x32x32xbf16, #tpu.memory_space<vmem>>, vector<1x32x32xbf16>
    %188 = vector.shape_cast %187 : vector<1x32x32xbf16> to vector<32x32xbf16>
    %cst_86 = arith.constant 0.000000e+00 : f32
    %189 = vector.broadcast %cst_86 : f32 to vector<16x32xf32>
    %190 = vector.extract_strided_slice %186 {offsets = [0, 0], sizes = [16, 16], strides = [1, 1]} : vector<16x96xbf16> to vector<16x16xbf16>
    %191 = vector.shape_cast %190 : vector<16x16xbf16> to vector<2x8x16xbf16>
    %192 = vector.extract_strided_slice %186 {offsets = [0, 32], sizes = [16, 16], strides = [1, 1]} : vector<16x96xbf16> to vector<16x16xbf16>
    %193 = vector.shape_cast %192 : vector<16x16xbf16> to vector<2x8x16xbf16>
    %194 = vector.extract_strided_slice %186 {offsets = [0, 64], sizes = [16, 16], strides = [1, 1]} : vector<16x96xbf16> to vector<16x16xbf16>
    %195 = vector.shape_cast %194 : vector<16x16xbf16> to vector<2x8x16xbf16>
    "tpu.trace_start"() <{level = 10 : i32, message = "bqd,bkd->bqk"}> : () -> ()
    %cst_87 = arith.constant dense<0.000000e+00> : vector<2x8x8xf32>
    %196 = tpu.matmul %191, %193, %cst_87 {dimension_numbers = #tpu.dot_dimension_numbers<[2], [2], [1], [1], [0, 0, 0, 1, 1, 1], [0], [0]>} : vector<2x8x16xbf16>, vector<2x8x16xbf16>, vector<2x8x8xf32> -> vector<2x8x8xf32>
    "tpu.trace_stop"() : () -> ()
    %197 = arith.addf %196, %28 : vector<2x8x8xf32>
    %cst_88 = arith.constant dense<0xFF800000> : vector<2x8xf32>
    %198 = vector.multi_reduction <maximumf>, %197, %cst_88 [2] : vector<2x8x8xf32> to vector<2x8xf32>
    %199 = vector.shape_cast %198 : vector<2x8xf32> to vector<2x8x1xf32>
    %200 = vector.broadcast %199 : vector<2x8x1xf32> to vector<2x8x8xf32>
    %201 = arith.subf %197, %200 : vector<2x8x8xf32>
    %202 = math.exp %201 : vector<2x8x8xf32>
    %cst_89 = arith.constant dense<0.000000e+00> : vector<2x8xf32>
    %203 = vector.multi_reduction <add>, %202, %cst_89 [2] : vector<2x8x8xf32> to vector<2x8xf32>
    %204 = vector.shape_cast %203 : vector<2x8xf32> to vector<2x8x1xf32>
    %205 = tpu.reciprocal %204 {approx = true} : vector<2x8x1xf32> -> vector<2x8x1xf32>
    %206 = vector.broadcast %205 : vector<2x8x1xf32> to vector<2x8x8xf32>
    %207 = arith.mulf %202, %206 : vector<2x8x8xf32>
    %208 = arith.truncf %207 : vector<2x8x8xf32> to vector<2x8x8xbf16>
    "tpu.trace_start"() <{level = 10 : i32, message = "bqk,bkd->bqd"}> : () -> ()
    %cst_90 = arith.constant dense<0.000000e+00> : vector<2x8x16xf32>
    %209 = tpu.matmul %208, %195, %cst_90 {dimension_numbers = #tpu.dot_dimension_numbers<[2], [1], [1], [2], [0, 0, 0, 1, 1, 2], [0], [0]>} : vector<2x8x8xbf16>, vector<2x8x16xbf16>, vector<2x8x16xf32> -> vector<2x8x16xf32>
    "tpu.trace_stop"() : () -> ()
    %210 = vector.shape_cast %209 : vector<2x8x16xf32> to vector<16x16xf32>
    %211 = arith.truncf %210 : vector<16x16xf32> to vector<16x16xbf16>
    %212 = vector.extract_strided_slice %188 {offsets = [0, 0], sizes = [16, 32], strides = [1, 1]} : vector<32x32xbf16> to vector<16x32xbf16>
    %cst_91 = arith.constant dense<0.000000e+00> : vector<16x32xf32>
    %213 = tpu.matmul %211, %212, %cst_91 {dimension_numbers = #tpu.dot_dimension_numbers<[1], [0], [0], [1], [0, 0, 1, 1], [], []>} : vector<16x16xbf16>, vector<16x32xbf16>, vector<16x32xf32> -> vector<16x32xf32>
    %214 = arith.addf %189, %213 : vector<16x32xf32>
    %215 = vector.extract_strided_slice %186 {offsets = [0, 16], sizes = [16, 16], strides = [1, 1]} : vector<16x96xbf16> to vector<16x16xbf16>
    %216 = vector.shape_cast %215 : vector<16x16xbf16> to vector<2x8x16xbf16>
    %217 = vector.extract_strided_slice %186 {offsets = [0, 48], sizes = [16, 16], strides = [1, 1]} : vector<16x96xbf16> to vector<16x16xbf16>
    %218 = vector.shape_cast %217 : vector<16x16xbf16> to vector<2x8x16xbf16>
    %219 = vector.extract_strided_slice %186 {offsets = [0, 80], sizes = [16, 16], strides = [1, 1]} : vector<16x96xbf16> to vector<16x16xbf16>
    %220 = vector.shape_cast %219 : vector<16x16xbf16> to vector<2x8x16xbf16>
    "tpu.trace_start"() <{level = 10 : i32, message = "bqd,bkd->bqk"}> : () -> ()
    %cst_92 = arith.constant dense<0.000000e+00> : vector<2x8x8xf32>
    %221 = tpu.matmul %216, %218, %cst_92 {dimension_numbers = #tpu.dot_dimension_numbers<[2], [2], [1], [1], [0, 0, 0, 1, 1, 1], [0], [0]>} : vector<2x8x16xbf16>, vector<2x8x16xbf16>, vector<2x8x8xf32> -> vector<2x8x8xf32>
    "tpu.trace_stop"() : () -> ()
    %222 = arith.addf %221, %28 : vector<2x8x8xf32>
    %cst_93 = arith.constant dense<0xFF800000> : vector<2x8xf32>
    %223 = vector.multi_reduction <maximumf>, %222, %cst_93 [2] : vector<2x8x8xf32> to vector<2x8xf32>
    %224 = vector.shape_cast %223 : vector<2x8xf32> to vector<2x8x1xf32>
    %225 = vector.broadcast %224 : vector<2x8x1xf32> to vector<2x8x8xf32>
    %226 = arith.subf %222, %225 : vector<2x8x8xf32>
    %227 = math.exp %226 : vector<2x8x8xf32>
    %cst_94 = arith.constant dense<0.000000e+00> : vector<2x8xf32>
    %228 = vector.multi_reduction <add>, %227, %cst_94 [2] : vector<2x8x8xf32> to vector<2x8xf32>
    %229 = vector.shape_cast %228 : vector<2x8xf32> to vector<2x8x1xf32>
    %230 = tpu.reciprocal %229 {approx = true} : vector<2x8x1xf32> -> vector<2x8x1xf32>
    %231 = vector.broadcast %230 : vector<2x8x1xf32> to vector<2x8x8xf32>
    %232 = arith.mulf %227, %231 : vector<2x8x8xf32>
    %233 = arith.truncf %232 : vector<2x8x8xf32> to vector<2x8x8xbf16>
    "tpu.trace_start"() <{level = 10 : i32, message = "bqk,bkd->bqd"}> : () -> ()
    %cst_95 = arith.constant dense<0.000000e+00> : vector<2x8x16xf32>
    %234 = tpu.matmul %233, %220, %cst_95 {dimension_numbers = #tpu.dot_dimension_numbers<[2], [1], [1], [2], [0, 0, 0, 1, 1, 2], [0], [0]>} : vector<2x8x8xbf16>, vector<2x8x16xbf16>, vector<2x8x16xf32> -> vector<2x8x16xf32>
    "tpu.trace_stop"() : () -> ()
    %235 = vector.shape_cast %234 : vector<2x8x16xf32> to vector<16x16xf32>
    %236 = arith.truncf %235 : vector<16x16xf32> to vector<16x16xbf16>
    %237 = vector.extract_strided_slice %188 {offsets = [16, 0], sizes = [16, 32], strides = [1, 1]} : vector<32x32xbf16> to vector<16x32xbf16>
    %cst_96 = arith.constant dense<0.000000e+00> : vector<16x32xf32>
    %238 = tpu.matmul %236, %237, %cst_96 {dimension_numbers = #tpu.dot_dimension_numbers<[1], [0], [0], [1], [0, 0, 1, 1], [], []>} : vector<16x16xbf16>, vector<16x32xbf16>, vector<16x32xf32> -> vector<16x32xf32>
    %239 = arith.addf %214, %238 : vector<16x32xf32>
    %c1_97 = arith.constant 1 : index
    %c0_98 = arith.constant 0 : index
    %c0_99 = arith.constant 0 : index
    %240 = vector.load %arg7[%c1_97, %c0_98, %c0_99] : memref<2x1x32xf32, #tpu.memory_space<vmem>>, vector<1x1x32xf32>
    %241 = vector.shape_cast %240 : vector<1x1x32xf32> to vector<1x32xf32>
    %242 = vector.broadcast %241 : vector<1x32xf32> to vector<16x32xf32>
    %243 = arith.addf %239, %242 : vector<16x32xf32>
    %244 = arith.addf %177, %243 : vector<16x32xf32>
    %c1_100 = arith.constant 1 : index
    %c0_101 = arith.constant 0 : index
    %c0_102 = arith.constant 0 : index
    %245 = vector.load %arg8[%c1_100, %c0_101, %c0_102] : memref<2x1x32xf32, #tpu.memory_space<vmem>>, vector<1x1x32xf32>
    %246 = vector.shape_cast %245 : vector<1x1x32xf32> to vector<1x32xf32>
    %c1_103 = arith.constant 1 : index
    %c0_104 = arith.constant 0 : index
    %c0_105 = arith.constant 0 : index
    %247 = vector.load %arg9[%c1_103, %c0_104, %c0_105] : memref<2x1x32xf32, #tpu.memory_space<vmem>>, vector<1x1x32xf32>
    %248 = vector.shape_cast %247 : vector<1x1x32xf32> to vector<1x32xf32>
    %cst_106 = arith.constant dense<0.000000e+00> : vector<16xf32>
    %249 = vector.multi_reduction <add>, %244, %cst_106 [1] : vector<16x32xf32> to vector<16xf32>
    %250 = vector.shape_cast %249 : vector<16xf32> to vector<16x1xf32>
    %cst_107 = arith.constant 3.200000e+01 : f32
    %251 = vector.broadcast %cst_107 : f32 to vector<16x1xf32>
    %252 = arith.divf %250, %251 : vector<16x1xf32>
    %253 = vector.broadcast %252 : vector<16x1xf32> to vector<16x32xf32>
    %254 = arith.subf %244, %253 : vector<16x32xf32>
    %255 = arith.mulf %254, %254 : vector<16x32xf32>
    %cst_108 = arith.constant dense<0.000000e+00> : vector<16xf32>
    %256 = vector.multi_reduction <add>, %255, %cst_108 [1] : vector<16x32xf32> to vector<16xf32>
    %257 = vector.shape_cast %256 : vector<16xf32> to vector<16x1xf32>
    %cst_109 = arith.constant 3.200000e+01 : f32
    %258 = vector.broadcast %cst_109 : f32 to vector<16x1xf32>
    %259 = arith.divf %257, %258 : vector<16x1xf32>
    %260 = vector.broadcast %252 : vector<16x1xf32> to vector<16x32xf32>
    %261 = arith.subf %244, %260 : vector<16x32xf32>
    %cst_110 = arith.constant 9.99999996E-13 : f32
    %262 = vector.broadcast %cst_110 : f32 to vector<16x1xf32>
    %263 = arith.addf %259, %262 : vector<16x1xf32>
    %264 = math.rsqrt %263 : vector<16x1xf32>
    %265 = vector.broadcast %264 : vector<16x1xf32> to vector<16x32xf32>
    %266 = arith.mulf %261, %265 : vector<16x32xf32>
    %267 = vector.broadcast %246 : vector<1x32xf32> to vector<16x32xf32>
    %268 = arith.mulf %266, %267 : vector<16x32xf32>
    %269 = vector.broadcast %248 : vector<1x32xf32> to vector<16x32xf32>
    %270 = arith.addf %268, %269 : vector<16x32xf32>
    %271 = arith.truncf %270 : vector<16x32xf32> to vector<16x32xbf16>
    %c1_111 = arith.constant 1 : index
    %c0_112 = arith.constant 0 : index
    %c0_113 = arith.constant 0 : index
    %272 = vector.load %arg10[%c1_111, %c0_112, %c0_113] : memref<2x32x64xbf16, #tpu.memory_space<vmem>>, vector<1x32x64xbf16>
    %273 = vector.shape_cast %272 : vector<1x32x64xbf16> to vector<32x64xbf16>
    %cst_114 = arith.constant dense<0.000000e+00> : vector<16x64xf32>
    %274 = tpu.matmul %271, %273, %cst_114 {dimension_numbers = #tpu.dot_dimension_numbers<[1], [0], [0], [1], [0, 0, 1, 1], [], []>} : vector<16x32xbf16>, vector<32x64xbf16>, vector<16x64xf32> -> vector<16x64xf32>
    %c1_115 = arith.constant 1 : index
    %c0_116 = arith.constant 0 : index
    %c0_117 = arith.constant 0 : index
    %275 = vector.load %arg11[%c1_115, %c0_116, %c0_117] : memref<2x1x64xf32, #tpu.memory_space<vmem>>, vector<1x1x64xf32>
    %276 = vector.shape_cast %275 : vector<1x1x64xf32> to vector<1x64xf32>
    %277 = vector.broadcast %276 : vector<1x64xf32> to vector<16x64xf32>
    %278 = arith.addf %274, %277 : vector<16x64xf32>
    %279 = arith.mulf %278, %278 : vector<16x64xf32>
    %280 = arith.mulf %278, %279 : vector<16x64xf32>
    %cst_118 = arith.constant 4.471500e-02 : f32
    %281 = vector.broadcast %cst_118 : f32 to vector<16x64xf32>
    %282 = arith.mulf %281, %280 : vector<16x64xf32>
    %283 = arith.addf %278, %282 : vector<16x64xf32>
    %cst_119 = arith.constant 0.797884583 : f32
    %284 = vector.broadcast %cst_119 : f32 to vector<16x64xf32>
    %285 = arith.mulf %284, %283 : vector<16x64xf32>
    %286 = math.tanh %285 : vector<16x64xf32>
    %cst_120 = arith.constant 1.000000e+00 : f32
    %287 = vector.broadcast %cst_120 : f32 to vector<16x64xf32>
    %288 = arith.addf %287, %286 : vector<16x64xf32>
    %cst_121 = arith.constant 5.000000e-01 : f32
    %289 = vector.broadcast %cst_121 : f32 to vector<16x64xf32>
    %290 = arith.mulf %289, %288 : vector<16x64xf32>
    %291 = arith.mulf %278, %290 : vector<16x64xf32>
    %292 = arith.truncf %291 : vector<16x64xf32> to vector<16x64xbf16>
    %c1_122 = arith.constant 1 : index
    %c0_123 = arith.constant 0 : index
    %c0_124 = arith.constant 0 : index
    %293 = vector.load %arg12[%c1_122, %c0_123, %c0_124] : memref<2x64x32xbf16, #tpu.memory_space<vmem>>, vector<1x64x32xbf16>
    %294 = vector.shape_cast %293 : vector<1x64x32xbf16> to vector<64x32xbf16>
    %cst_125 = arith.constant dense<0.000000e+00> : vector<16x32xf32>
    %295 = tpu.matmul %292, %294, %cst_125 {dimension_numbers = #tpu.dot_dimension_numbers<[1], [0], [0], [1], [0, 0, 1, 1], [], []>} : vector<16x64xbf16>, vector<64x32xbf16>, vector<16x32xf32> -> vector<16x32xf32>
    %c1_126 = arith.constant 1 : index
    %c0_127 = arith.constant 0 : index
    %c0_128 = arith.constant 0 : index
    %296 = vector.load %arg13[%c1_126, %c0_127, %c0_128] : memref<2x1x32xf32, #tpu.memory_space<vmem>>, vector<1x1x32xf32>
    %297 = vector.shape_cast %296 : vector<1x1x32xf32> to vector<1x32xf32>
    %298 = vector.broadcast %297 : vector<1x32xf32> to vector<16x32xf32>
    %299 = arith.addf %295, %298 : vector<16x32xf32>
    %300 = arith.addf %270, %299 : vector<16x32xf32>
    %c1_129 = arith.constant 1 : index
    %c0_130 = arith.constant 0 : index
    %c0_131 = arith.constant 0 : index
    %301 = vector.load %arg14[%c1_129, %c0_130, %c0_131] : memref<2x1x32xf32, #tpu.memory_space<vmem>>, vector<1x1x32xf32>
    %302 = vector.shape_cast %301 : vector<1x1x32xf32> to vector<1x32xf32>
    %c1_132 = arith.constant 1 : index
    %c0_133 = arith.constant 0 : index
    %c0_134 = arith.constant 0 : index
    %303 = vector.load %arg15[%c1_132, %c0_133, %c0_134] : memref<2x1x32xf32, #tpu.memory_space<vmem>>, vector<1x1x32xf32>
    %304 = vector.shape_cast %303 : vector<1x1x32xf32> to vector<1x32xf32>
    %cst_135 = arith.constant dense<0.000000e+00> : vector<16xf32>
    %305 = vector.multi_reduction <add>, %300, %cst_135 [1] : vector<16x32xf32> to vector<16xf32>
    %306 = vector.shape_cast %305 : vector<16xf32> to vector<16x1xf32>
    %cst_136 = arith.constant 3.200000e+01 : f32
    %307 = vector.broadcast %cst_136 : f32 to vector<16x1xf32>
    %308 = arith.divf %306, %307 : vector<16x1xf32>
    %309 = vector.broadcast %308 : vector<16x1xf32> to vector<16x32xf32>
    %310 = arith.subf %300, %309 : vector<16x32xf32>
    %311 = arith.mulf %310, %310 : vector<16x32xf32>
    %cst_137 = arith.constant dense<0.000000e+00> : vector<16xf32>
    %312 = vector.multi_reduction <add>, %311, %cst_137 [1] : vector<16x32xf32> to vector<16xf32>
    %313 = vector.shape_cast %312 : vector<16xf32> to vector<16x1xf32>
    %cst_138 = arith.constant 3.200000e+01 : f32
    %314 = vector.broadcast %cst_138 : f32 to vector<16x1xf32>
    %315 = arith.divf %313, %314 : vector<16x1xf32>
    %316 = vector.broadcast %308 : vector<16x1xf32> to vector<16x32xf32>
    %317 = arith.subf %300, %316 : vector<16x32xf32>
    %cst_139 = arith.constant 9.99999996E-13 : f32
    %318 = vector.broadcast %cst_139 : f32 to vector<16x1xf32>
    %319 = arith.addf %315, %318 : vector<16x1xf32>
    %320 = math.rsqrt %319 : vector<16x1xf32>
    %321 = vector.broadcast %320 : vector<16x1xf32> to vector<16x32xf32>
    %322 = arith.mulf %317, %321 : vector<16x32xf32>
    %323 = vector.broadcast %302 : vector<1x32xf32> to vector<16x32xf32>
    %324 = arith.mulf %322, %323 : vector<16x32xf32>
    %325 = vector.broadcast %304 : vector<1x32xf32> to vector<16x32xf32>
    %326 = arith.addf %324, %325 : vector<16x32xf32>
    %327 = arith.truncf %326 : vector<16x32xf32> to vector<16x32xbf16>
    %c0_140 = arith.constant 0 : index
    %c0_141 = arith.constant 0 : index
    %328 = vector.load %arg16[%c0_140, %c0_141] : memref<32x128xbf16, #tpu.memory_space<vmem>>, vector<32x128xbf16>
    %cst_142 = arith.constant dense<0.000000e+00> : vector<16x128xf32>
    %329 = tpu.matmul %327, %328, %cst_142 {dimension_numbers = #tpu.dot_dimension_numbers<[1], [0], [0], [1], [0, 0, 1, 1], [], []>} : vector<16x32xbf16>, vector<32x128xbf16>, vector<16x128xf32> -> vector<16x128xf32>
    %c0_143 = arith.constant 0 : index
    %c0_144 = arith.constant 0 : index
    %330 = vector.load %arg17[%c0_143, %c0_144] : memref<1x128xf32, #tpu.memory_space<vmem>>, vector<1x128xf32>
    %331 = vector.broadcast %330 : vector<1x128xf32> to vector<16x128xf32>
    %332 = arith.addf %329, %331 : vector<16x128xf32>
    %c0_145 = arith.constant 0 : index
    %c0_146 = arith.constant 0 : index
    %333 = vector.load %arg20[%c0_145, %c0_146] : memref<16x128xf32, #tpu.memory_space<vmem>>, vector<16x128xf32>
    tpu.vector_store %arg20[%c0_145, %c0_146], %332 {strides = array<i32>} : memref<16x128xf32, #tpu.memory_space<vmem>>, vector<16x128xf32>,
    %334 = vector.shape_cast %327 : vector<16x32xbf16> to vector<2x8x32xbf16>
    %335 = vector.extract_strided_slice %334 {offsets = [0, 0, 0], sizes = [2, 1, 32], strides = [1, 1, 1]} : vector<2x8x32xbf16> to vector<2x1x32xbf16>
    %336 = vector.shape_cast %335 : vector<2x1x32xbf16> to vector<2x32xbf16>
    %c0_147 = arith.constant 0 : index
    %c0_148 = arith.constant 0 : index
    %337 = vector.load %arg18[%c0_147, %c0_148] : memref<32x2xbf16, #tpu.memory_space<vmem>>, vector<32x2xbf16>
    %cst_149 = arith.constant dense<0.000000e+00> : vector<2x2xf32>
    %338 = tpu.matmul %336, %337, %cst_149 {dimension_numbers = #tpu.dot_dimension_numbers<[1], [0], [0], [1], [0, 0, 1, 1], [], []>} : vector<2x32xbf16>, vector<32x2xbf16>, vector<2x2xf32> -> vector<2x2xf32>
    %c0_150 = arith.constant 0 : index
    %c0_151 = arith.constant 0 : index
    %339 = vector.load %arg19[%c0_150, %c0_151] : memref<1x2xf32, #tpu.memory_space<vmem>>, vector<1x2xf32>
    %340 = vector.broadcast %339 : vector<1x2xf32> to vector<2x2xf32>
    %341 = arith.addf %338, %340 : vector<2x2xf32>
    %c0_152 = arith.constant 0 : index
    %c0_153 = arith.constant 0 : index
    %342 = vector.load %arg21[%c0_152, %c0_153] : memref<2x2xf32, #tpu.memory_space<vmem>>, vector<2x2xf32>
    tpu.vector_store %arg21[%c0_152, %c0_153], %341 {strides = array<i32>} : memref<2x2xf32, #tpu.memory_space<vmem>>, vector<2x2xf32>,
    return
  }
}

</mosaic_0001>

<llo_original>
// kernel: tpu_custom_call.1
$region0: #{tpu_custom_call.1}
  #allocation0 [shape = 'u32[]', space=smem, size = 0x4, offset = 0x4, fixed_abs, tag = 'smem constant byte address 0x4 - core index']
  #allocation1 [shape = 'u32[144,128]{1,0:T(1,128)}', space=vmem, size = 0x12000, scoped, tag = 'internal scratch']
  %s0 = inlined_call_operand.vmem [shape: f32[2,8,32], index: 0, kind: input, shape index: {}]
  %s1 = inlined_call_operand.vmem [shape: f32[2,1,8], index: 1, kind: input, shape index: {}]
  %s2 = inlined_call_operand.hbm [shape: f32[1,32], index: 2, kind: input, shape index: {}]
  %s3 = inlined_call_operand.hbm [shape: f32[1,32], index: 3, kind: input, shape index: {}]
  %s4 = inlined_call_operand.vmem [shape: bf16[2,32,96], index: 4, kind: input, shape index: {}]
  %s5 = inlined_call_operand.hbm [shape: f32[2,1,96], index: 5, kind: input, shape index: {}]
  %s6 = inlined_call_operand.vmem [shape: bf16[2,32,32], index: 6, kind: input, shape index: {}]
  %s7 = inlined_call_operand.hbm [shape: f32[2,1,32], index: 7, kind: input, shape index: {}]
  %s8 = inlined_call_operand.hbm [shape: f32[2,1,32], index: 8, kind: input, shape index: {}]
  %s9 = inlined_call_operand.hbm [shape: f32[2,1,32], index: 9, kind: input, shape index: {}]
  %s10 = inlined_call_operand.vmem [shape: bf16[2,32,64], index: 10, kind: input, shape index: {}]
  %s11 = inlined_call_operand.hbm [shape: f32[2,1,64], index: 11, kind: input, shape index: {}]
  %s12 = inlined_call_operand.vmem [shape: bf16[2,64,32], index: 12, kind: input, shape index: {}]
  %s13 = inlined_call_operand.hbm [shape: f32[2,1,32], index: 13, kind: input, shape index: {}]
  %s14 = inlined_call_operand.vmem [shape: f32[2,1,32], index: 14, kind: input, shape index: {}]
  %s15 = inlined_call_operand.vmem [shape: f32[2,1,32], index: 15, kind: input, shape index: {}]
  %s16 = inlined_call_operand.vmem [shape: bf16[32,128], index: 16, kind: input, shape index: {}]
  %s17 = inlined_call_operand.vmem [shape: f32[1,128], index: 17, kind: input, shape index: {}]
  %s18 = inlined_call_operand.vmem [shape: bf16[32,2], index: 18, kind: input, shape index: {}]
  %s19 = inlined_call_operand.vmem [shape: f32[1,2], index: 19, kind: input, shape index: {}]
  %s20 = inlined_call_operand.hbm [shape: f32[16,128], index: 20, kind: output, shape index: {0}]
  %s21 = inlined_call_operand.hbm [shape: f32[2,2], index: 21, kind: output, shape index: {1}]
  %22 = xla_tuple %s20, %s21
  %s23 = sld [smem:[#allocation0]]
  $region130: #{tpu_custom_call.1} parent=0
    _
  %s25 = ssub.s32 1, %s23
  %s26 = scalar_select 0, %s25, %s23
  $region1: #{tpu_custom_call.1} parent=0
    #allocation2 [shape = 'u8[512]{0}', space=vmem, size = 0x400, scoped, tag = 'input window, operand 2, single buffered']
    #allocation3 [shape = 's32[1]{0}', space=sflag, size = 0x4, scoped, tag = 'scoped memory for tpu_custom_call.1']
    #allocation4 [shape = 's32[1]{0}', space=sflag, size = 0x4, scoped, tag = 'scoped memory for tpu_custom_call.1']
    #allocation5 [shape = 'u8[512]{0}', space=vmem, size = 0x400, scoped, tag = 'input window, operand 3, single buffered']
    #allocation6 [shape = 's32[1]{0}', space=sflag, size = 0x4, scoped, tag = 'scoped memory for tpu_custom_call.1']
    #allocation7 [shape = 'u8[1024]{0}', space=vmem, size = 0x400, scoped, tag = 'input window, operand 5, single buffered']
    #allocation8 [shape = 'u8[1024]{0}', space=vmem, size = 0x400, scoped, tag = 'input window, operand 7, single buffered']
    #allocation9 [shape = 's32[1]{0}', space=sflag, size = 0x4, scoped, tag = 'scoped memory for tpu_custom_call.1']
    #allocation10 [shape = 'u8[1024]{0}', space=vmem, size = 0x400, scoped, tag = 'input window, operand 8, single buffered']
    #allocation11 [shape = 'u8[1024]{0}', space=vmem, size = 0x400, scoped, tag = 'input window, operand 9, single buffered']
    #allocation12 [shape = 's32[1]{0}', space=sflag, size = 0x4, scoped, tag = 'scoped memory for tpu_custom_call.1']
    #allocation13 [shape = 'u8[1024]{0}', space=vmem, size = 0x400, scoped, tag = 'input window, operand 11, single buffered']
    #allocation14 [shape = 'u8[1024]{0}', space=vmem, size = 0x400, scoped, tag = 'input window, operand 13, single buffered']
    #allocation15 [shape = 's32[1]{0}', space=sflag, size = 0x4, scoped, tag = 'scoped memory for tpu_custom_call.1']
    #allocation16 [shape = 'u8[8192]{0}', space=vmem, size = 0x2000, scoped, tag = 'output window, operand 0, single buffered']
    #allocation17 [shape = 'u8[1024]{0}', space=vmem, size = 0x400, scoped, tag = 'output window, operand 1, single buffered']
    #allocation18 [shape = 's32[1]{0}', space=sflag, size = 0x4, scoped, tag = 'scoped memory for tpu_custom_call.1']
    %27 = vsyncpa [#allocation3], 0
    %28 = vsyncpa [#allocation6], 0
    %29 = vsyncpa [#allocation9], 0
    %30 = vsyncpa [#allocation12], 0
    %31 = vsyncpa [#allocation15], 0
    %32 = vsyncpa [#allocation4], 0
    %33 = vsyncpa [#allocation18], 0
    // Predicated region
    $region2: #{tpu_custom_call.1} parent=1 // pred_check
      _
    $region3: #{tpu_custom_call.1} parent=1 // pred_check_branch
      %35 = sbr.rel (0) target = $region5
    $region4: #{tpu_custom_call.1} parent=1 // pred_region
      _
    $region5: #{tpu_custom_call.1} parent=1 // pred_fallthru
      _
    // Predicated region
    $region6: #{tpu_custom_call.1} parent=1 // pred_check
      _
    $region7: #{tpu_custom_call.1} parent=1 // pred_check_branch
      %37 = sbr.rel (0) target = $region9
    $region8: #{tpu_custom_call.1} parent=1 // pred_region
      _
    $region9: #{tpu_custom_call.1} parent=1 // pred_fallthru
      _
    // Predicated region
    $region10: #{tpu_custom_call.1} parent=1 // pred_check
      _
    $region11: #{tpu_custom_call.1} parent=1 // pred_check_branch
      %39 = sbr.rel (0) target = $region13
    $region12: #{tpu_custom_call.1} parent=1 // pred_region
      %s41 = ssub.s32 16, 16
      %42 = vsyncadd [#allocation3], %s41
      %s44 = sshll.u32 [#allocation2], 4
      %s45 = int_to_ptr.vmem [resolvable:$true] %s44
      %47 = dma.hbm_to_vmem [thread:$0]  %s2, 16, %s45, [#allocation3]
    $region13: #{tpu_custom_call.1} parent=1 // pred_fallthru
      _
    // Predicated region
    $region14: #{tpu_custom_call.1} parent=1 // pred_check
      _
    $region15: #{tpu_custom_call.1} parent=1 // pred_check_branch
      %49 = sbr.rel (0) target = $region17
    $region16: #{tpu_custom_call.1} parent=1 // pred_region
      %s51 = ssub.s32 16, 16
      %52 = vsyncadd [#allocation6], %s51
      %s54 = sshll.u32 [#allocation5], 4
      %s55 = int_to_ptr.vmem [resolvable:$true] %s54
      %57 = dma.hbm_to_vmem [thread:$0]  %s3, 16, %s55, [#allocation6]
    $region17: #{tpu_custom_call.1} parent=1 // pred_fallthru
      _
    // Predicated region
    $region18: #{tpu_custom_call.1} parent=1 // pred_check
      _
    $region19: #{tpu_custom_call.1} parent=1 // pred_check_branch
      %59 = sbr.rel (0) target = $region21
    $region20: #{tpu_custom_call.1} parent=1 // pred_region
      _
    $region21: #{tpu_custom_call.1} parent=1 // pred_fallthru
      _
    // Predicated region
    $region22: #{tpu_custom_call.1} parent=1 // pred_check
      _
    $region23: #{tpu_custom_call.1} parent=1 // pred_check_branch
      %61 = sbr.rel (0) target = $region25
    $region24: #{tpu_custom_call.1} parent=1 // pred_region
      %s63 = ssub.s32 32, 32
      %64 = vsyncadd [#allocation6], %s63
      %s65 = sshll.u32 [#allocation7], 4
      %s66 = int_to_ptr.vmem [resolvable:$true] %s65
      %71 = dma.hbm_to_vmem [thread:$0]  %s5, 32, %s66, [#allocation6], 16, 16, 1
    $region25: #{tpu_custom_call.1} parent=1 // pred_fallthru
      _
    // Predicated region
    $region26: #{tpu_custom_call.1} parent=1 // pred_check
      _
    $region27: #{tpu_custom_call.1} parent=1 // pred_check_branch
      %73 = sbr.rel (0) target = $region29
    $region28: #{tpu_custom_call.1} parent=1 // pred_region
      _
    $region29: #{tpu_custom_call.1} parent=1 // pred_fallthru
      _
    // Predicated region
    $region30: #{tpu_custom_call.1} parent=1 // pred_check
      _
    $region31: #{tpu_custom_call.1} parent=1 // pred_check_branch
      %75 = sbr.rel (0) target = $region33
    $region32: #{tpu_custom_call.1} parent=1 // pred_region
      %s77 = ssub.s32 32, 32
      %78 = vsyncadd [#allocation9], %s77
      %s79 = sshll.u32 [#allocation8], 4
      %s80 = int_to_ptr.vmem [resolvable:$true] %s79
      %85 = dma.hbm_to_vmem [thread:$0]  %s7, 32, %s80, [#allocation9], 16, 16, 1
    $region33: #{tpu_custom_call.1} parent=1 // pred_fallthru
      _
    // Predicated region
    $region34: #{tpu_custom_call.1} parent=1 // pred_check
      _
    $region35: #{tpu_custom_call.1} parent=1 // pred_check_branch
      %87 = sbr.rel (0) target = $region37
    $region36: #{tpu_custom_call.1} parent=1 // pred_region
      %s89 = ssub.s32 32, 32
      %90 = vsyncadd [#allocation9], %s89
      %s91 = sshll.u32 [#allocation10], 4
      %s92 = int_to_ptr.vmem [resolvable:$true] %s91
      %97 = dma.hbm_to_vmem [thread:$0]  %s8, 32, %s92, [#allocation9], 16, 16, 1
    $region37: #{tpu_custom_call.1} parent=1 // pred_fallthru
      _
    // Predicated region
    $region38: #{tpu_custom_call.1} parent=1 // pred_check
      _
    $region39: #{tpu_custom_call.1} parent=1 // pred_check_branch
      %99 = sbr.rel (0) target = $region41
    $region40: #{tpu_custom_call.1} parent=1 // pred_region
      %s101 = ssub.s32 32, 32
      %102 = vsyncadd [#allocation12], %s101
      %s103 = sshll.u32 [#allocation11], 4
      %s104 = int_to_ptr.vmem [resolvable:$true] %s103
      %109 = dma.hbm_to_vmem [thread:$0]  %s9, 32, %s104, [#allocation12], 16, 16, 1
    $region41: #{tpu_custom_call.1} parent=1 // pred_fallthru
      _
    // Predicated region
    $region42: #{tpu_custom_call.1} parent=1 // pred_check
      _
    $region43: #{tpu_custom_call.1} parent=1 // pred_check_branch
      %111 = sbr.rel (0) target = $region45
    $region44: #{tpu_custom_call.1} parent=1 // pred_region
      _
    $region45: #{tpu_custom_call.1} parent=1 // pred_fallthru
      _
    // Predicated region
    $region46: #{tpu_custom_call.1} parent=1 // pred_check
      _
    $region47: #{tpu_custom_call.1} parent=1 // pred_check_branch
      %113 = sbr.rel (0) target = $region49
    $region48: #{tpu_custom_call.1} parent=1 // pred_region
      %s115 = ssub.s32 32, 32
      %116 = vsyncadd [#allocation12], %s115
      %s117 = sshll.u32 [#allocation13], 4
      %s118 = int_to_ptr.vmem [resolvable:$true] %s117
      %123 = dma.hbm_to_vmem [thread:$0]  %s11, 32, %s118, [#allocation12], 16, 16, 1
    $region49: #{tpu_custom_call.1} parent=1 // pred_fallthru
      _
    // Predicated region
    $region50: #{tpu_custom_call.1} parent=1 // pred_check
      _
    $region51: #{tpu_custom_call.1} parent=1 // pred_check_branch
      %125 = sbr.rel (0) target = $region53
    $region52: #{tpu_custom_call.1} parent=1 // pred_region
      _
    $region53: #{tpu_custom_call.1} parent=1 // pred_fallthru
      _
    // Predicated region
    $region54: #{tpu_custom_call.1} parent=1 // pred_check
      _
    $region55: #{tpu_custom_call.1} parent=1 // pred_check_branch
      %127 = sbr.rel (0) target = $region57
    $region56: #{tpu_custom_call.1} parent=1 // pred_region
      %s129 = ssub.s32 32, 32
      %130 = vsyncadd [#allocation15], %s129
      %s131 = sshll.u32 [#allocation14], 4
      %s132 = int_to_ptr.vmem [resolvable:$true] %s131
      %137 = dma.hbm_to_vmem [thread:$0]  %s13, 32, %s132, [#allocation15], 16, 16, 1
    $region57: #{tpu_custom_call.1} parent=1 // pred_fallthru
      _
    // Predicated region
    $region58: #{tpu_custom_call.1} parent=1 // pred_check
      _
    $region59: #{tpu_custom_call.1} parent=1 // pred_check_branch
      %139 = sbr.rel (0) target = $region61
    $region60: #{tpu_custom_call.1} parent=1 // pred_region
      _
    $region61: #{tpu_custom_call.1} parent=1 // pred_fallthru
      _
    // Predicated region
    $region62: #{tpu_custom_call.1} parent=1 // pred_check
      _
    $region63: #{tpu_custom_call.1} parent=1 // pred_check_branch
      %141 = sbr.rel (0) target = $region65
    $region64: #{tpu_custom_call.1} parent=1 // pred_region
      _
    $region65: #{tpu_custom_call.1} parent=1 // pred_fallthru
      _
    // Predicated region
    $region66: #{tpu_custom_call.1} parent=1 // pred_check
      _
    $region67: #{tpu_custom_call.1} parent=1 // pred_check_branch
      %143 = sbr.rel (0) target = $region69
    $region68: #{tpu_custom_call.1} parent=1 // pred_region
      _
    $region69: #{tpu_custom_call.1} parent=1 // pred_fallthru
      _
    // Predicated region
    $region70: #{tpu_custom_call.1} parent=1 // pred_check
      _
    $region71: #{tpu_custom_call.1} parent=1 // pred_check_branch
      %145 = sbr.rel (0) target = $region73
    $region72: #{tpu_custom_call.1} parent=1 // pred_region
      _
    $region73: #{tpu_custom_call.1} parent=1 // pred_fallthru
      _
    // Predicated region
    $region74: #{tpu_custom_call.1} parent=1 // pred_check
      _
    $region75: #{tpu_custom_call.1} parent=1 // pred_check_branch
      %147 = sbr.rel (0) target = $region77
    $region76: #{tpu_custom_call.1} parent=1 // pred_region
      _
    $region77: #{tpu_custom_call.1} parent=1 // pred_fallthru
      _
    // Predicated region
    $region78: #{tpu_custom_call.1} parent=1 // pred_check
      _
    $region79: #{tpu_custom_call.1} parent=1 // pred_check_branch
      %149 = sbr.rel (0) target = $region81
    $region80: #{tpu_custom_call.1} parent=1 // pred_region
      _
    $region81: #{tpu_custom_call.1} parent=1 // pred_fallthru
      _
    // Predicated region
    $region82: #{tpu_custom_call.1} parent=1 // pred_check
      _
    $region83: #{tpu_custom_call.1} parent=1 // pred_check_branch
      %151 = sbr.rel (0) target = $region85
    $region84: #{tpu_custom_call.1} parent=1 // pred_region
      %152 = dma.done [#allocation3], 16
    $region85: #{tpu_custom_call.1} parent=1 // pred_fallthru
      _
    // Predicated region
    $region86: #{tpu_custom_call.1} parent=1 // pred_check
      _
    $region87: #{tpu_custom_call.1} parent=1 // pred_check_branch
      %154 = sbr.rel (0) target = $region89
    $region88: #{tpu_custom_call.1} parent=1 // pred_region
      %155 = dma.done [#allocation6], 16
    $region89: #{tpu_custom_call.1} parent=1 // pred_fallthru
      _
    // Predicated region
    $region90: #{tpu_custom_call.1} parent=1 // pred_check
      _
    $region91: #{tpu_custom_call.1} parent=1 // pred_check_branch
      %157 = sbr.rel (0) target = $region93
    $region92: #{tpu_custom_call.1} parent=1 // pred_region
      %158 = dma.done [#allocation6], 32
    $region93: #{tpu_custom_call.1} parent=1 // pred_fallthru
      _
    // Predicated region
    $region94: #{tpu_custom_call.1} parent=1 // pred_check
      _
    $region95: #{tpu_custom_call.1} parent=1 // pred_check_branch
      %160 = sbr.rel (0) target = $region97
    $region96: #{tpu_custom_call.1} parent=1 // pred_region
      %161 = dma.done [#allocation9], 32
    $region97: #{tpu_custom_call.1} parent=1 // pred_fallthru
      _
    // Predicated region
    $region98: #{tpu_custom_call.1} parent=1 // pred_check
      _
    $region99: #{tpu_custom_call.1} parent=1 // pred_check_branch
      %163 = sbr.rel (0) target = $region101
    $region100: #{tpu_custom_call.1} parent=1 // pred_region
      %164 = dma.done [#allocation9], 32
    $region101: #{tpu_custom_call.1} parent=1 // pred_fallthru
      _
    // Predicated region
    $region102: #{tpu_custom_call.1} parent=1 // pred_check
      _
    $region103: #{tpu_custom_call.1} parent=1 // pred_check_branch
      %166 = sbr.rel (0) target = $region105
    $region104: #{tpu_custom_call.1} parent=1 // pred_region
      %167 = dma.done [#allocation12], 32
    $region105: #{tpu_custom_call.1} parent=1 // pred_fallthru
      _
    // Predicated region
    $region106: #{tpu_custom_call.1} parent=1 // pred_check
      _
    $region107: #{tpu_custom_call.1} parent=1 // pred_check_branch
      %169 = sbr.rel (0) target = $region109
    $region108: #{tpu_custom_call.1} parent=1 // pred_region
      %170 = dma.done [#allocation12], 32
    $region109: #{tpu_custom_call.1} parent=1 // pred_fallthru
      _
    // Predicated region
    $region110: #{tpu_custom_call.1} parent=1 // pred_check
      _
    $region111: #{tpu_custom_call.1} parent=1 // pred_check_branch
      %172 = sbr.rel (0) target = $region113
    $region112: #{tpu_custom_call.1} parent=1 // pred_region
      %173 = dma.done [#allocation15], 32
    $region113: #{tpu_custom_call.1} parent=1 // pred_fallthru
      _
    %v175 = vld [vmem:[%s0] sm:$0xff]
    %v176 = vld [vmem:[%s0 + $0x8] sm:$0xff]
    %v177 = vld [vmem:[#allocation2] sm:$0x1]
    %v178 = vld [vmem:[#allocation5] sm:$0x1]
    %vm179 = vcmask 261120
    %v180 = vsel %vm179, %v175, 0.0
    %181 = vadd.xlane.f32.xlu0 %v180
    %v182 = vpop.xlane.xlu0 %181
    %v183 = vsel %vm179, %v176, 0.0
    %184 = vadd.xlane.f32.xlu0 %v183
    %v185 = vpop.xlane.xlu0 %184
    %v186 = vrcp.pop 32.0
    %v187 = vmul.f32 %v182, %v186
    %v188 = vmul.f32 %v185, %v186
    %v189 = vsub.f32 %v175, %v187
    %v190 = vsub.f32 %v176, %v188
    %v191 = vmul.f32 %v189, %v189
    %v192 = vmul.f32 %v190, %v190
    %v193 = vsel %vm179, %v191, 0.0
    %194 = vadd.xlane.f32.xlu0 %v193
    %v195 = vpop.xlane.xlu0 %194
    %v196 = vsel %vm179, %v192, 0.0
    %197 = vadd.xlane.f32.xlu0 %v196
    %v198 = vpop.xlane.xlu0 %197
    %v199 = vmul.f32 %v195, %v186
    %v200 = vmul.f32 %v198, %v186
    %v201 = vadd.f32 %v199, 1e-12
    %v202 = vadd.f32 %v200, 1e-12
    %v203 = vrsqrt.pop %v201
    %v204 = vrsqrt.pop %v202
    %v205 = vmul.f32 %v189, %v203
    %v206 = vmul.f32 %v190, %v204
    %v208 = vlaneseq
    %v209 = vshrl.u32 %v208, 7
    %v210 = vsub.s32 0, %v209
    %v211 = vrot.slane %v177, %v210
    %v213 = vmul.f32 %v205, %v211
    %v214 = vmul.f32 %v206, %v211
    %v216 = vlaneseq
    %v217 = vshrl.u32 %v216, 7
    %v218 = vsub.s32 0, %v217
    %v219 = vrot.slane %v178, %v218
    %v221 = vadd.f32 %v213, %v219
    %v222 = vadd.f32 %v214, %v219
    %v223 = vld [vmem:[%s1] sm:$0x1]
    %v224 = vld [vmem:[%s1 + $0x1] sm:$0x1]
    %v227 = vlaneseq
    %v228 = vshrl.u32 %v227, 7
    %v229 = vsub.s32 0, %v228
    %v230 = vrot.slane %v223, %v229
    %v231 = vlaneseq
    %v232 = vshrl.u32 %v231, 7
    %v233 = vsub.s32 0, %v232
    %v234 = vrot.slane %v224, %v233
    %v237 = vpack.c.bf16 %v222, %v221
    %v238 = vld [vmem:[%s4] sm:$0xf]
    %v239 = vld [vmem:[%s4 + $0x4] sm:$0xf]
    %v240 = vld [vmem:[%s4 + $0x8] sm:$0xf]
    %v241 = vld [vmem:[%s4 + $0xc] sm:$0xf]
    %v242 = vld [vmem:[#allocation7] sm:$0x1]
    %v244 = vlaneseq
    %v245 = vshrl.u32 %v244, 7
    %v246 = vsub.s32 0, %v245
    %v247 = vrot.slane %v242, %v246
    %v253 = vunpack.c.l.b16 %v238
    %v254 = vunpack.c.l.b16 %v239
    %v255 = vunpack.c.l.b16 %v240
    %v256 = vunpack.c.l.b16 %v241
    %v257 = vpack.c.b16 %v254, %v253
    %v258 = vpack.c.b16 %v256, %v255
    %v262 = vsel %vm179, %v237, 0
    %264 = vmatprep.subr.bf16.mxu0 0
    %265 = vmatpush1.bf16.msra.mxu0 %v257
    %266 = vmatprep.subr.bf16.mxu0 0
    %267 = vmatpush1.bf16.msra.mxu0 %v258
    %268 = vmatprep.subr.bf16.mxu0 0
    %269 = vmatpush1.bf16.msra.mxu0 0
    %270 = vmatprep.subr.bf16.mxu0 0
    %271 = vmatpush1.bf16.msra.mxu0 0
    %272 = vmatprep.subr.bf16.mxu0 0
    %273 = vmatpush1.bf16.msra.mxu0 0
    %274 = vmatprep.subr.bf16.mxu0 0
    %275 = vmatpush1.bf16.msra.mxu0 0
    %276 = vmatprep.subr.bf16.mxu0 0
    %277 = vmatpush1.bf16.msra.mxu0 0
    %278 = vmatprep.subr.bf16.mxu0 0
    %279 = vmatpush1.bf16.msra.mxu0 0
    %280 = vmatprep.subr.bf16.mxu0 0
    %281 = vmatpush1.bf16.msra.mxu0 0
    %282 = vmatprep.subr.bf16.mxu0 0
    %283 = vmatpush1.bf16.msra.mxu0 0
    %284 = vmatprep.subr.bf16.mxu0 0
    %285 = vmatpush1.bf16.msra.mxu0 0
    %286 = vmatprep.subr.bf16.mxu0 0
    %287 = vmatpush1.bf16.msra.mxu0 0
    %288 = vmatprep.subr.bf16.mxu0 0
    %289 = vmatpush1.bf16.msra.mxu0 0
    %290 = vmatprep.subr.bf16.mxu0 0
    %291 = vmatpush1.bf16.msra.mxu0 0
    %292 = vmatprep.subr.bf16.mxu0 0
    %293 = vmatpush1.bf16.msra.mxu0 0
    %294 = vmatprep.subr.bf16.mxu0 0
    %295 = vmatpush1.bf16.msra.mxu0 0
    %296 = vmatprep.mubr.bf16.mxu0 0
    %297 = vmatmul.mubr.bf16.gmra.mrb[0].mxu0 %v262
    %v298 = vpop.f32.mrb[0].mxu0
    %v299 = vadd.f32 %v247, %v298
    %v300 = vpop.f32.mrb[0].mxu0
    %v301 = vpop.f32.mrb[0].mxu0
    %v302 = vadd.f32 %v247, %v301
    %v303 = vpop.f32.mrb[0].mxu0
    %304 = vdwg.mxu0
    %v305 = vpack.c.bf16 %v302, %v299
    %v306 = vld [vmem:[%s6] sm:$0xf]
    %v307 = vld [vmem:[%s6 + $0x4] sm:$0xf]
    %v308 = vld [vmem:[%s6 + $0x8] sm:$0xf]
    %v309 = vld [vmem:[%s6 + $0xc] sm:$0xf]
    %v311 = vunpack.c.l.b16 %v305
    %v312 = vunpack.c.h.b16 %v305
    %v313 = vpack.c.b16 %v311, %v311
    %v314 = vpack.c.b16 %v312, %v312
    %315 = vrot.lane.b32.xlu0 %v313, 96
    %v316 = vpop.permute.xlu0 %315
    %vm317 = vcmask 130048
    %v319 = vsel %vm317, %v313, 0
    %v322 = vsel %vm317, %v316, 0
    %324 = vmatprep.subr.bf16.mxu0 0
    %325 = vmatpush1.bf16.xpose.msra.mxu0 %v322
    %326 = vmatprep.subr.bf16.mxu0 0
    %327 = vmatpush1.bf16.xpose.msra.mxu0 0
    %328 = vmatprep.subr.bf16.mxu0 0
    %329 = vmatpush1.bf16.xpose.msra.mxu0 0
    %330 = vmatprep.subr.bf16.mxu0 0
    %331 = vmatpush1.bf16.xpose.msra.mxu0 0
    %332 = vmatprep.subr.bf16.mxu0 0
    %333 = vmatpush1.bf16.xpose.msra.mxu0 0
    %334 = vmatprep.subr.bf16.mxu0 0
    %335 = vmatpush1.bf16.xpose.msra.mxu0 0
    %336 = vmatprep.subr.bf16.mxu0 0
    %337 = vmatpush1.bf16.xpose.msra.mxu0 0
    %338 = vmatprep.subr.bf16.mxu0 0
    %339 = vmatpush1.bf16.xpose.msra.mxu0 0
    %340 = vmatprep.subr.bf16.mxu0 0
    %341 = vmatpush1.bf16.xpose.msra.mxu0 0
    %342 = vmatprep.subr.bf16.mxu0 0
    %343 = vmatpush1.bf16.xpose.msra.mxu0 0
    %344 = vmatprep.subr.bf16.mxu0 0
    %345 = vmatpush1.bf16.xpose.msra.mxu0 0
    %346 = vmatprep.subr.bf16.mxu0 0
    %347 = vmatpush1.bf16.xpose.msra.mxu0 0
    %348 = vmatprep.subr.bf16.mxu0 0
    %349 = vmatpush1.bf16.xpose.msra.mxu0 0
    %350 = vmatprep.subr.bf16.mxu0 0
    %351 = vmatpush1.bf16.xpose.msra.mxu0 0
    %352 = vmatprep.subr.bf16.mxu0 0
    %353 = vmatpush1.bf16.xpose.msra.mxu0 0
    %354 = vmatprep.subr.bf16.mxu0 0
    %355 = vmatpush1.bf16.xpose.msra.mxu0 0
    %356 = vmatprep.mubr.bf16.mxu0 0
    %357 = vmatmul.mubr.bf16.gmra.mrb[0].mxu0 %v319
    %v358 = vpop.f32.mrb[0].mxu0
    %v359 = vadd.f32 %v230, %v358
    %v360 = vpop.f32.mrb[0].mxu0
    %v361 = vpop.f32.mrb[0].mxu0
    %v362 = vpop.f32.mrb[0].mxu0
    %363 = vdwg.mxu0
    %364 = vrot.lane.b32.xlu0 %v314, 96
    %v365 = vpop.permute.xlu0 %364
    %v367 = vsel %vm317, %v314, 0
    %v370 = vsel %vm317, %v365, 0
    %372 = vmatprep.subr.bf16.mxu0 0
    %373 = vmatpush1.bf16.xpose.msra.mxu0 %v370
    %374 = vmatprep.subr.bf16.mxu0 0
    %375 = vmatpush1.bf16.xpose.msra.mxu0 0
    %376 = vmatprep.subr.bf16.mxu0 0
    %377 = vmatpush1.bf16.xpose.msra.mxu0 0
    %378 = vmatprep.subr.bf16.mxu0 0
    %379 = vmatpush1.bf16.xpose.msra.mxu0 0
    %380 = vmatprep.subr.bf16.mxu0 0
    %381 = vmatpush1.bf16.xpose.msra.mxu0 0
    %382 = vmatprep.subr.bf16.mxu0 0
    %383 = vmatpush1.bf16.xpose.msra.mxu0 0
    %384 = vmatprep.subr.bf16.mxu0 0
    %385 = vmatpush1.bf16.xpose.msra.mxu0 0
    %386 = vmatprep.subr.bf16.mxu0 0
    %387 = vmatpush1.bf16.xpose.msra.mxu0 0
    %388 = vmatprep.subr.bf16.mxu0 0
    %389 = vmatpush1.bf16.xpose.msra.mxu0 0
    %390 = vmatprep.subr.bf16.mxu0 0
    %391 = vmatpush1.bf16.xpose.msra.mxu0 0
    %392 = vmatprep.subr.bf16.mxu0 0
    %393 = vmatpush1.bf16.xpose.msra.mxu0 0
    %394 = vmatprep.subr.bf16.mxu0 0
    %395 = vmatpush1.bf16.xpose.msra.mxu0 0
    %396 = vmatprep.subr.bf16.mxu0 0
    %397 = vmatpush1.bf16.xpose.msra.mxu0 0
    %398 = vmatprep.subr.bf16.mxu0 0
    %399 = vmatpush1.bf16.xpose.msra.mxu0 0
    %400 = vmatprep.subr.bf16.mxu0 0
    %401 = vmatpush1.bf16.xpose.msra.mxu0 0
    %402 = vmatprep.subr.bf16.mxu0 0
    %403 = vmatpush1.bf16.xpose.msra.mxu0 0
    %404 = vmatprep.mubr.bf16.mxu0 0
    %405 = vmatmul.mubr.bf16.gmra.mrb[0].mxu0 %v367
    %v406 = vpop.f32.mrb[0].mxu0
    %v407 = vadd.f32 %v234, %v406
    %v408 = vpop.f32.mrb[0].mxu0
    %v409 = vpop.f32.mrb[0].mxu0
    %v410 = vpop.f32.mrb[0].mxu0
    %411 = vdwg.mxu0
    %vm412 = vcmask 64512
    %v413 = vsel %vm412, %v359, -inf
    %414 = vmax.xlane.f32.xlu0 %v413
    %v415 = vpop.xlane.xlu0 %414
    %v416 = vsel %vm412, %v407, -inf
    %417 = vmax.xlane.f32.xlu0 %v416
    %v418 = vpop.xlane.xlu0 %417
    %v419 = vsub.f32 %v359, %v415
    %v420 = vsub.f32 %v407, %v418
    %v421 = vmul.f32 %v419, 1.442695
    %v422 = vpow.pop %v421
    %v423 = vmul.f32 %v420, 1.442695
    %v424 = vpow.pop %v423
    %v425 = vsel %vm412, %v422, 0.0
    %426 = vadd.xlane.f32.xlu0 %v425
    %v427 = vpop.xlane.xlu0 %426
    %v428 = vsel %vm412, %v424, 0.0
    %429 = vadd.xlane.f32.xlu0 %v428
    %v430 = vpop.xlane.xlu0 %429
    %v431 = vrcp.pop %v427
    %v432 = vrcp.pop %v430
    %v433 = vmul.f32 %v422, %v431
    %v434 = vmul.f32 %v424, %v432
    %v435 = vpack.c.bf16 %v433, %v433
    %v436 = vpack.c.bf16 %v434, %v434
    %437 = vrot.lane.b32.xlu0 %v313, 64
    %v438 = vpop.permute.xlu0 %437
    %v440 = vsel %vm412, %v435, 0
    %vm442 = vcmask 1043456
    %v444 = vsel %vm442, %v438, 0
    %446 = vmatprep.subr.bf16.mxu0 0
    %447 = vmatpush1.bf16.msra.mxu0 %v444
    %448 = vmatprep.subr.bf16.mxu0 0
    %449 = vmatpush1.bf16.msra.mxu0 0
    %450 = vmatprep.subr.bf16.mxu0 0
    %451 = vmatpush1.bf16.msra.mxu0 0
    %452 = vmatprep.subr.bf16.mxu0 0
    %453 = vmatpush1.bf16.msra.mxu0 0
    %454 = vmatprep.subr.bf16.mxu0 0
    %455 = vmatpush1.bf16.msra.mxu0 0
    %456 = vmatprep.subr.bf16.mxu0 0
    %457 = vmatpush1.bf16.msra.mxu0 0
    %458 = vmatprep.subr.bf16.mxu0 0
    %459 = vmatpush1.bf16.msra.mxu0 0
    %460 = vmatprep.subr.bf16.mxu0 0
    %461 = vmatpush1.bf16.msra.mxu0 0
    %462 = vmatprep.subr.bf16.mxu0 0
    %463 = vmatpush1.bf16.msra.mxu0 0
    %464 = vmatprep.subr.bf16.mxu0 0
    %465 = vmatpush1.bf16.msra.mxu0 0
    %466 = vmatprep.subr.bf16.mxu0 0
    %467 = vmatpush1.bf16.msra.mxu0 0
    %468 = vmatprep.subr.bf16.mxu0 0
    %469 = vmatpush1.bf16.msra.mxu0 0
    %470 = vmatprep.subr.bf16.mxu0 0
    %471 = vmatpush1.bf16.msra.mxu0 0
    %472 = vmatprep.subr.bf16.mxu0 0
    %473 = vmatpush1.bf16.msra.mxu0 0
    %474 = vmatprep.subr.bf16.mxu0 0
    %475 = vmatpush1.bf16.msra.mxu0 0
    %476 = vmatprep.subr.bf16.mxu0 0
    %477 = vmatpush1.bf16.msra.mxu0 0
    %478 = vmatprep.mubr.bf16.mxu0 0
    %479 = vmatmul.mubr.bf16.gmra.mrb[0].mxu0 %v440
    %v480 = vpop.f32.mrb[0].mxu0
    %v481 = vadd.f32 0.0, %v480
    %v482 = vpop.f32.mrb[0].mxu0
    %v483 = vpop.f32.mrb[0].mxu0
    %v484 = vpop.f32.mrb[0].mxu0
    %485 = vdwg.mxu0
    %486 = vrot.lane.b32.xlu0 %v314, 64
    %v487 = vpop.permute.xlu0 %486
    %v489 = vsel %vm412, %v436, 0
    %v492 = vsel %vm442, %v487, 0
    %494 = vmatprep.subr.bf16.mxu0 0
    %495 = vmatpush1.bf16.msra.mxu0 %v492
    %496 = vmatprep.subr.bf16.mxu0 0
    %497 = vmatpush1.bf16.msra.mxu0 0
    %498 = vmatprep.subr.bf16.mxu0 0
    %499 = vmatpush1.bf16.msra.mxu0 0
    %500 = vmatprep.subr.bf16.mxu0 0
    %501 = vmatpush1.bf16.msra.mxu0 0
    %502 = vmatprep.subr.bf16.mxu0 0
    %503 = vmatpush1.bf16.msra.mxu0 0
    %504 = vmatprep.subr.bf16.mxu0 0
    %505 = vmatpush1.bf16.msra.mxu0 0
    %506 = vmatprep.subr.bf16.mxu0 0
    %507 = vmatpush1.bf16.msra.mxu0 0
    %508 = vmatprep.subr.bf16.mxu0 0
    %509 = vmatpush1.bf16.msra.mxu0 0
    %510 = vmatprep.subr.bf16.mxu0 0
    %511 = vmatpush1.bf16.msra.mxu0 0
    %512 = vmatprep.subr.bf16.mxu0 0
    %513 = vmatpush1.bf16.msra.mxu0 0
    %514 = vmatprep.subr.bf16.mxu0 0
    %515 = vmatpush1.bf16.msra.mxu0 0
    %516 = vmatprep.subr.bf16.mxu0 0
    %517 = vmatpush1.bf16.msra.mxu0 0
    %518 = vmatprep.subr.bf16.mxu0 0
    %519 = vmatpush1.bf16.msra.mxu0 0
    %520 = vmatprep.subr.bf16.mxu0 0
    %521 = vmatpush1.bf16.msra.mxu0 0
    %522 = vmatprep.subr.bf16.mxu0 0
    %523 = vmatpush1.bf16.msra.mxu0 0
    %524 = vmatprep.subr.bf16.mxu0 0
    %525 = vmatpush1.bf16.msra.mxu0 0
    %526 = vmatprep.mubr.bf16.mxu0 0
    %527 = vmatmul.mubr.bf16.gmra.mrb[0].mxu0 %v489
    %v528 = vpop.f32.mrb[0].mxu0
    %v529 = vadd.f32 0.0, %v528
    %v530 = vpop.f32.mrb[0].mxu0
    %v531 = vpop.f32.mrb[0].mxu0
    %v532 = vpop.f32.mrb[0].mxu0
    %533 = vdwg.mxu0
    %v534 = vpack.c.bf16 %v529, %v481
    %535 = vrot.lane.b32.xlu0 %v313, 112
    %v536 = vpop.permute.xlu0 %535
    %537 = vrot.lane.b32.xlu0 %v313, 80
    %v538 = vpop.permute.xlu0 %537
    %v540 = vsel %vm317, %v536, 0
    %v543 = vsel %vm317, %v538, 0
    %545 = vmatprep.subr.bf16.mxu0 0
    %546 = vmatpush1.bf16.xpose.msra.mxu0 %v543
    %547 = vmatprep.subr.bf16.mxu0 0
    %548 = vmatpush1.bf16.xpose.msra.mxu0 0
    %549 = vmatprep.subr.bf16.mxu0 0
    %550 = vmatpush1.bf16.xpose.msra.mxu0 0
    %551 = vmatprep.subr.bf16.mxu0 0
    %552 = vmatpush1.bf16.xpose.msra.mxu0 0
    %553 = vmatprep.subr.bf16.mxu0 0
    %554 = vmatpush1.bf16.xpose.msra.mxu0 0
    %555 = vmatprep.subr.bf16.mxu0 0
    %556 = vmatpush1.bf16.xpose.msra.mxu0 0
    %557 = vmatprep.subr.bf16.mxu0 0
    %558 = vmatpush1.bf16.xpose.msra.mxu0 0
    %559 = vmatprep.subr.bf16.mxu0 0
    %560 = vmatpush1.bf16.xpose.msra.mxu0 0
    %561 = vmatprep.subr.bf16.mxu0 0
    %562 = vmatpush1.bf16.xpose.msra.mxu0 0
    %563 = vmatprep.subr.bf16.mxu0 0
    %564 = vmatpush1.bf16.xpose.msra.mxu0 0
    %565 = vmatprep.subr.bf16.mxu0 0
    %566 = vmatpush1.bf16.xpose.msra.mxu0 0
    %567 = vmatprep.subr.bf16.mxu0 0
    %568 = vmatpush1.bf16.xpose.msra.mxu0 0
    %569 = vmatprep.subr.bf16.mxu0 0
    %570 = vmatpush1.bf16.xpose.msra.mxu0 0
    %571 = vmatprep.subr.bf16.mxu0 0
    %572 = vmatpush1.bf16.xpose.msra.mxu0 0
    %573 = vmatprep.subr.bf16.mxu0 0
    %574 = vmatpush1.bf16.xpose.msra.mxu0 0
    %575 = vmatprep.subr.bf16.mxu0 0
    %576 = vmatpush1.bf16.xpose.msra.mxu0 0
    %577 = vmatprep.mubr.bf16.mxu0 0
    %578 = vmatmul.mubr.bf16.gmra.mrb[0].mxu0 %v540
    %v579 = vpop.f32.mrb[0].mxu0
    %v580 = vadd.f32 %v230, %v579
    %v581 = vpop.f32.mrb[0].mxu0
    %v582 = vpop.f32.mrb[0].mxu0
    %v583 = vpop.f32.mrb[0].mxu0
    %584 = vdwg.mxu0
    %585 = vrot.lane.b32.xlu0 %v314, 112
    %v586 = vpop.permute.xlu0 %585
    %587 = vrot.lane.b32.xlu0 %v314, 80
    %v588 = vpop.permute.xlu0 %587
    %v590 = vsel %vm317, %v586, 0
    %v593 = vsel %vm317, %v588, 0
    %595 = vmatprep.subr.bf16.mxu0 0
    %596 = vmatpush1.bf16.xpose.msra.mxu0 %v593
    %597 = vmatprep.subr.bf16.mxu0 0
    %598 = vmatpush1.bf16.xpose.msra.mxu0 0
    %599 = vmatprep.subr.bf16.mxu0 0
    %600 = vmatpush1.bf16.xpose.msra.mxu0 0
    %601 = vmatprep.subr.bf16.mxu0 0
    %602 = vmatpush1.bf16.xpose.msra.mxu0 0
    %603 = vmatprep.subr.bf16.mxu0 0
    %604 = vmatpush1.bf16.xpose.msra.mxu0 0
    %605 = vmatprep.subr.bf16.mxu0 0
    %606 = vmatpush1.bf16.xpose.msra.mxu0 0
    %607 = vmatprep.subr.bf16.mxu0 0
    %608 = vmatpush1.bf16.xpose.msra.mxu0 0
    %609 = vmatprep.subr.bf16.mxu0 0
    %610 = vmatpush1.bf16.xpose.msra.mxu0 0
    %611 = vmatprep.subr.bf16.mxu0 0
    %612 = vmatpush1.bf16.xpose.msra.mxu0 0
    %613 = vmatprep.subr.bf16.mxu0 0
    %614 = vmatpush1.bf16.xpose.msra.mxu0 0
    %615 = vmatprep.subr.bf16.mxu0 0
    %616 = vmatpush1.bf16.xpose.msra.mxu0 0
    %617 = vmatprep.subr.bf16.mxu0 0
    %618 = vmatpush1.bf16.xpose.msra.mxu0 0
    %619 = vmatprep.subr.bf16.mxu0 0
    %620 = vmatpush1.bf16.xpose.msra.mxu0 0
    %621 = vmatprep.subr.bf16.mxu0 0
    %622 = vmatpush1.bf16.xpose.msra.mxu0 0
    %623 = vmatprep.subr.bf16.mxu0 0
    %624 = vmatpush1.bf16.xpose.msra.mxu0 0
    %625 = vmatprep.subr.bf16.mxu0 0
    %626 = vmatpush1.bf16.xpose.msra.mxu0 0
    %627 = vmatprep.mubr.bf16.mxu0 0
    %628 = vmatmul.mubr.bf16.gmra.mrb[0].mxu0 %v590
    %v629 = vpop.f32.mrb[0].mxu0
    %v630 = vadd.f32 %v234, %v629
    %v631 = vpop.f32.mrb[0].mxu0
    %v632 = vpop.f32.mrb[0].mxu0
    %v633 = vpop.f32.mrb[0].mxu0
    %634 = vdwg.mxu0
    %v635 = vsel %vm412, %v580, -inf
    %636 = vmax.xlane.f32.xlu0 %v635
    %v637 = vpop.xlane.xlu0 %636
    %v638 = vsel %vm412, %v630, -inf
    %639 = vmax.xlane.f32.xlu0 %v638
    %v640 = vpop.xlane.xlu0 %639
    %v641 = vsub.f32 %v580, %v637
    %v642 = vsub.f32 %v630, %v640
    %v643 = vmul.f32 %v641, 1.442695
    %v644 = vpow.pop %v643
    %v645 = vmul.f32 %v642, 1.442695
    %v646 = vpow.pop %v645
    %v647 = vsel %vm412, %v644, 0.0
    %648 = vadd.xlane.f32.xlu0 %v647
    %v649 = vpop.xlane.xlu0 %648
    %v650 = vsel %vm412, %v646, 0.0
    %651 = vadd.xlane.f32.xlu0 %v650
    %v652 = vpop.xlane.xlu0 %651
    %v653 = vrcp.pop %v649
    %v654 = vrcp.pop %v652
    %v655 = vmul.f32 %v644, %v653
    %v656 = vmul.f32 %v646, %v654
    %v657 = vpack.c.bf16 %v655, %v655
    %v658 = vpack.c.bf16 %v656, %v656
    %659 = vrot.lane.b32.xlu0 %v313, 48
    %v660 = vpop.permute.xlu0 %659
    %v662 = vsel %vm412, %v657, 0
    %v665 = vsel %vm442, %v660, 0
    %667 = vmatprep.subr.bf16.mxu0 0
    %668 = vmatpush1.bf16.msra.mxu0 %v665
    %669 = vmatprep.subr.bf16.mxu0 0
    %670 = vmatpush1.bf16.msra.mxu0 0
    %671 = vmatprep.subr.bf16.mxu0 0
    %672 = vmatpush1.bf16.msra.mxu0 0
    %673 = vmatprep.subr.bf16.mxu0 0
    %674 = vmatpush1.bf16.msra.mxu0 0
    %675 = vmatprep.subr.bf16.mxu0 0
    %676 = vmatpush1.bf16.msra.mxu0 0
    %677 = vmatprep.subr.bf16.mxu0 0
    %678 = vmatpush1.bf16.msra.mxu0 0
    %679 = vmatprep.subr.bf16.mxu0 0
    %680 = vmatpush1.bf16.msra.mxu0 0
    %681 = vmatprep.subr.bf16.mxu0 0
    %682 = vmatpush1.bf16.msra.mxu0 0
    %683 = vmatprep.subr.bf16.mxu0 0
    %684 = vmatpush1.bf16.msra.mxu0 0
    %685 = vmatprep.subr.bf16.mxu0 0
    %686 = vmatpush1.bf16.msra.mxu0 0
    %687 = vmatprep.subr.bf16.mxu0 0
    %688 = vmatpush1.bf16.msra.mxu0 0
    %689 = vmatprep.subr.bf16.mxu0 0
    %690 = vmatpush1.bf16.msra.mxu0 0
    %691 = vmatprep.subr.bf16.mxu0 0
    %692 = vmatpush1.bf16.msra.mxu0 0
    %693 = vmatprep.subr.bf16.mxu0 0
    %694 = vmatpush1.bf16.msra.mxu0 0
    %695 = vmatprep.subr.bf16.mxu0 0
    %696 = vmatpush1.bf16.msra.mxu0 0
    %697 = vmatprep.subr.bf16.mxu0 0
    %698 = vmatpush1.bf16.msra.mxu0 0
    %699 = vmatprep.mubr.bf16.mxu0 0
    %700 = vmatmul.mubr.bf16.gmra.mrb[0].mxu0 %v662
    %v701 = vpop.f32.mrb[0].mxu0
    %v702 = vadd.f32 0.0, %v701
    %v703 = vpop.f32.mrb[0].mxu0
    %v704 = vpop.f32.mrb[0].mxu0
    %v705 = vpop.f32.mrb[0].mxu0
    %706 = vdwg.mxu0
    %707 = vrot.lane.b32.xlu0 %v314, 48
    %v708 = vpop.permute.xlu0 %707
    %v710 = vsel %vm412, %v658, 0
    %v713 = vsel %vm442, %v708, 0
    %715 = vmatprep.subr.bf16.mxu0 0
    %716 = vmatpush1.bf16.msra.mxu0 %v713
    %717 = vmatprep.subr.bf16.mxu0 0
    %718 = vmatpush1.bf16.msra.mxu0 0
    %719 = vmatprep.subr.bf16.mxu0 0
    %720 = vmatpush1.bf16.msra.mxu0 0
    %721 = vmatprep.subr.bf16.mxu0 0
    %722 = vmatpush1.bf16.msra.mxu0 0
    %723 = vmatprep.subr.bf16.mxu0 0
    %724 = vmatpush1.bf16.msra.mxu0 0
    %725 = vmatprep.subr.bf16.mxu0 0
    %726 = vmatpush1.bf16.msra.mxu0 0
    %727 = vmatprep.subr.bf16.mxu0 0
    %728 = vmatpush1.bf16.msra.mxu0 0
    %729 = vmatprep.subr.bf16.mxu0 0
    %730 = vmatpush1.bf16.msra.mxu0 0
    %731 = vmatprep.subr.bf16.mxu0 0
    %732 = vmatpush1.bf16.msra.mxu0 0
    %733 = vmatprep.subr.bf16.mxu0 0
    %734 = vmatpush1.bf16.msra.mxu0 0
    %735 = vmatprep.subr.bf16.mxu0 0
    %736 = vmatpush1.bf16.msra.mxu0 0
    %737 = vmatprep.subr.bf16.mxu0 0
    %738 = vmatpush1.bf16.msra.mxu0 0
    %739 = vmatprep.subr.bf16.mxu0 0
    %740 = vmatpush1.bf16.msra.mxu0 0
    %741 = vmatprep.subr.bf16.mxu0 0
    %742 = vmatpush1.bf16.msra.mxu0 0
    %743 = vmatprep.subr.bf16.mxu0 0
    %744 = vmatpush1.bf16.msra.mxu0 0
    %745 = vmatprep.subr.bf16.mxu0 0
    %746 = vmatpush1.bf16.msra.mxu0 0
    %747 = vmatprep.mubr.bf16.mxu0 0
    %748 = vmatmul.mubr.bf16.gmra.mrb[0].mxu0 %v710
    %v749 = vpop.f32.mrb[0].mxu0
    %v750 = vadd.f32 0.0, %v749
    %v751 = vpop.f32.mrb[0].mxu0
    %v752 = vpop.f32.mrb[0].mxu0
    %v753 = vpop.f32.mrb[0].mxu0
    %754 = vdwg.mxu0
    %v755 = vpack.c.bf16 %v750, %v702
    %v758 = vunpack.c.l.b16 %v308
    %v759 = vunpack.c.l.b16 %v309
    %v760 = vpack.c.b16 %v759, %v758
    %v763 = vsel %vm317, %v755, 0
    %765 = vmatprep.subr.bf16.mxu0 0
    %766 = vmatpush1.bf16.msra.mxu0 %v760
    %767 = vmatprep.subr.bf16.mxu0 0
    %768 = vmatpush1.bf16.msra.mxu0 0
    %769 = vmatprep.subr.bf16.mxu0 0
    %770 = vmatpush1.bf16.msra.mxu0 0
    %771 = vmatprep.subr.bf16.mxu0 0
    %772 = vmatpush1.bf16.msra.mxu0 0
    %773 = vmatprep.subr.bf16.mxu0 0
    %774 = vmatpush1.bf16.msra.mxu0 0
    %775 = vmatprep.subr.bf16.mxu0 0
    %776 = vmatpush1.bf16.msra.mxu0 0
    %777 = vmatprep.subr.bf16.mxu0 0
    %778 = vmatpush1.bf16.msra.mxu0 0
    %779 = vmatprep.subr.bf16.mxu0 0
    %780 = vmatpush1.bf16.msra.mxu0 0
    %781 = vmatprep.subr.bf16.mxu0 0
    %782 = vmatpush1.bf16.msra.mxu0 0
    %783 = vmatprep.subr.bf16.mxu0 0
    %784 = vmatpush1.bf16.msra.mxu0 0
    %785 = vmatprep.subr.bf16.mxu0 0
    %786 = vmatpush1.bf16.msra.mxu0 0
    %787 = vmatprep.subr.bf16.mxu0 0
    %788 = vmatpush1.bf16.msra.mxu0 0
    %789 = vmatprep.subr.bf16.mxu0 0
    %790 = vmatpush1.bf16.msra.mxu0 0
    %791 = vmatprep.subr.bf16.mxu0 0
    %792 = vmatpush1.bf16.msra.mxu0 0
    %793 = vmatprep.subr.bf16.mxu0 0
    %794 = vmatpush1.bf16.msra.mxu0 0
    %795 = vmatprep.subr.bf16.mxu0 0
    %796 = vmatpush1.bf16.msra.mxu0 0
    %797 = vmatprep.mubr.bf16.mxu0 0
    %798 = vmatmul.mubr.bf16.gmra.mrb[0].mxu0 %v763
    %v799 = vpop.f32.mrb[0].mxu0
    %v800 = vadd.f32 0.0, %v799
    %v801 = vpop.f32.mrb[0].mxu0
    %v802 = vpop.f32.mrb[0].mxu0
    %v803 = vadd.f32 0.0, %v802
    %v804 = vpop.f32.mrb[0].mxu0
    %805 = vdwg.mxu0
    %v808 = vunpack.c.l.b16 %v306
    %v809 = vunpack.c.l.b16 %v307
    %v810 = vpack.c.b16 %v809, %v808
    %v813 = vsel %vm317, %v534, 0
    %815 = vmatprep.subr.bf16.mxu0 0
    %816 = vmatpush1.bf16.msra.mxu0 %v810
    %817 = vmatprep.subr.bf16.mxu0 0
    %818 = vmatpush1.bf16.msra.mxu0 0
    %819 = vmatprep.subr.bf16.mxu0 0
    %820 = vmatpush1.bf16.msra.mxu0 0
    %821 = vmatprep.subr.bf16.mxu0 0
    %822 = vmatpush1.bf16.msra.mxu0 0
    %823 = vmatprep.subr.bf16.mxu0 0
    %824 = vmatpush1.bf16.msra.mxu0 0
    %825 = vmatprep.subr.bf16.mxu0 0
    %826 = vmatpush1.bf16.msra.mxu0 0
    %827 = vmatprep.subr.bf16.mxu0 0
    %828 = vmatpush1.bf16.msra.mxu0 0
    %829 = vmatprep.subr.bf16.mxu0 0
    %830 = vmatpush1.bf16.msra.mxu0 0
    %831 = vmatprep.subr.bf16.mxu0 0
    %832 = vmatpush1.bf16.msra.mxu0 0
    %833 = vmatprep.subr.bf16.mxu0 0
    %834 = vmatpush1.bf16.msra.mxu0 0
    %835 = vmatprep.subr.bf16.mxu0 0
    %836 = vmatpush1.bf16.msra.mxu0 0
    %837 = vmatprep.subr.bf16.mxu0 0
    %838 = vmatpush1.bf16.msra.mxu0 0
    %839 = vmatprep.subr.bf16.mxu0 0
    %840 = vmatpush1.bf16.msra.mxu0 0
    %841 = vmatprep.subr.bf16.mxu0 0
    %842 = vmatpush1.bf16.msra.mxu0 0
    %843 = vmatprep.subr.bf16.mxu0 0
    %844 = vmatpush1.bf16.msra.mxu0 0
    %845 = vmatprep.subr.bf16.mxu0 0
    %846 = vmatpush1.bf16.msra.mxu0 0
    %847 = vmatprep.mubr.bf16.mxu0 0
    %848 = vmatmul.mubr.bf16.gmra.mrb[0].mxu0 %v813
    %v849 = vpop.f32.mrb[0].mxu0
    %v850 = vadd.f32 %v800, %v849
    %v851 = vpop.f32.mrb[0].mxu0
    %v852 = vpop.f32.mrb[0].mxu0
    %v853 = vadd.f32 %v803, %v852
    %v854 = vpop.f32.mrb[0].mxu0
    %855 = vdwg.mxu0
    %v856 = vld [vmem:[#allocation8] sm:$0x1]
    %v858 = vlaneseq
    %v859 = vshrl.u32 %v858, 7
    %v860 = vsub.s32 0, %v859
    %v861 = vrot.slane %v856, %v860
    %v863 = vadd.f32 %v850, %v861
    %v864 = vadd.f32 %v853, %v861
    %v865 = vadd.f32 %v221, %v863
    %v866 = vadd.f32 %v222, %v864
    %v867 = vld [vmem:[#allocation10] sm:$0x1]
    %v868 = vld [vmem:[#allocation11] sm:$0x1]
    %v869 = vsel %vm179, %v865, 0.0
    %870 = vadd.xlane.f32.xlu0 %v869
    %v871 = vpop.xlane.xlu0 %870
    %v872 = vsel %vm179, %v866, 0.0
    %873 = vadd.xlane.f32.xlu0 %v872
    %v874 = vpop.xlane.xlu0 %873
    %v875 = vmul.f32 %v871, %v186
    %v876 = vmul.f32 %v874, %v186
    %v877 = vsub.f32 %v865, %v875
    %v878 = vsub.f32 %v866, %v876
    %v879 = vmul.f32 %v877, %v877
    %v880 = vmul.f32 %v878, %v878
    %v881 = vsel %vm179, %v879, 0.0
    %882 = vadd.xlane.f32.xlu0 %v881
    %v883 = vpop.xlane.xlu0 %882
    %v884 = vsel %vm179, %v880, 0.0
    %885 = vadd.xlane.f32.xlu0 %v884
    %v886 = vpop.xlane.xlu0 %885
    %v887 = vmul.f32 %v883, %v186
    %v888 = vmul.f32 %v886, %v186
    %v889 = vadd.f32 %v887, 1e-12
    %v890 = vadd.f32 %v888, 1e-12
    %v891 = vrsqrt.pop %v889
    %v892 = vrsqrt.pop %v890
    %v893 = vmul.f32 %v877, %v891
    %v894 = vmul.f32 %v878, %v892
    %v896 = vlaneseq
    %v897 = vshrl.u32 %v896, 7
    %v898 = vsub.s32 0, %v897
    %v899 = vrot.slane %v867, %v898
    %v901 = vmul.f32 %v893, %v899
    %v902 = vmul.f32 %v894, %v899
    %v904 = vlaneseq
    %v905 = vshrl.u32 %v904, 7
    %v906 = vsub.s32 0, %v905
    %v907 = vrot.slane %v868, %v906
    %v909 = vadd.f32 %v901, %v907
    %v910 = vadd.f32 %v902, %v907
    %v911 = vpack.c.bf16 %v910, %v909
    %v912 = vld [vmem:[%s10] sm:$0xf]
    %v913 = vld [vmem:[%s10 + $0x4] sm:$0xf]
    %v914 = vld [vmem:[%s10 + $0x8] sm:$0xf]
    %v915 = vld [vmem:[%s10 + $0xc] sm:$0xf]
    %v916 = vld [vmem:[#allocation13] sm:$0x1]
    %v918 = vlaneseq
    %v919 = vshrl.u32 %v918, 7
    %v920 = vsub.s32 0, %v919
    %v921 = vrot.slane %v916, %v920
    %v927 = vunpack.c.l.b16 %v912
    %v928 = vunpack.c.l.b16 %v913
    %v929 = vunpack.c.l.b16 %v914
    %v930 = vunpack.c.l.b16 %v915
    %v931 = vpack.c.b16 %v928, %v927
    %v932 = vpack.c.b16 %v930, %v929
    %v936 = vsel %vm179, %v911, 0
    %938 = vmatprep.subr.bf16.mxu0 0
    %939 = vmatpush1.bf16.msra.mxu0 %v931
    %940 = vmatprep.subr.bf16.mxu0 0
    %941 = vmatpush1.bf16.msra.mxu0 %v932
    %942 = vmatprep.subr.bf16.mxu0 0
    %943 = vmatpush1.bf16.msra.mxu0 0
    %944 = vmatprep.subr.bf16.mxu0 0
    %945 = vmatpush1.bf16.msra.mxu0 0
    %946 = vmatprep.subr.bf16.mxu0 0
    %947 = vmatpush1.bf16.msra.mxu0 0
    %948 = vmatprep.subr.bf16.mxu0 0
    %949 = vmatpush1.bf16.msra.mxu0 0
    %950 = vmatprep.subr.bf16.mxu0 0
    %951 = vmatpush1.bf16.msra.mxu0 0
    %952 = vmatprep.subr.bf16.mxu0 0
    %953 = vmatpush1.bf16.msra.mxu0 0
    %954 = vmatprep.subr.bf16.mxu0 0
    %955 = vmatpush1.bf16.msra.mxu0 0
    %956 = vmatprep.subr.bf16.mxu0 0
    %957 = vmatpush1.bf16.msra.mxu0 0
    %958 = vmatprep.subr.bf16.mxu0 0
    %959 = vmatpush1.bf16.msra.mxu0 0
    %960 = vmatprep.subr.bf16.mxu0 0
    %961 = vmatpush1.bf16.msra.mxu0 0
    %962 = vmatprep.subr.bf16.mxu0 0
    %963 = vmatpush1.bf16.msra.mxu0 0
    %964 = vmatprep.subr.bf16.mxu0 0
    %965 = vmatpush1.bf16.msra.mxu0 0
    %966 = vmatprep.subr.bf16.mxu0 0
    %967 = vmatpush1.bf16.msra.mxu0 0
    %968 = vmatprep.subr.bf16.mxu0 0
    %969 = vmatpush1.bf16.msra.mxu0 0
    %970 = vmatprep.mubr.bf16.mxu0 0
    %971 = vmatmul.mubr.bf16.gmra.mrb[0].mxu0 %v936
    %v972 = vpop.f32.mrb[0].mxu0
    %v973 = vadd.f32 %v921, %v972
    %v974 = vpop.f32.mrb[0].mxu0
    %v975 = vpop.f32.mrb[0].mxu0
    %v976 = vadd.f32 %v921, %v975
    %v977 = vpop.f32.mrb[0].mxu0
    %978 = vdwg.mxu0
    %v979 = vmul.f32 %v973, %v973
    %v980 = vmul.f32 %v976, %v976
    %v981 = vmul.f32 %v973, %v979
    %v982 = vmul.f32 %v976, %v980
    %v983 = vmul.f32 %v981, 0.044715
    %v984 = vmul.f32 %v982, 0.044715
    %v985 = vadd.f32 %v973, %v983
    %v986 = vadd.f32 %v976, %v984
    %v987 = vmul.f32 %v985, 0.7978846
    %v988 = vmul.f32 %v986, 0.7978846
    %v989 = vtanh.pop %v987
    %v990 = vtanh.pop %v988
    %v991 = vadd.f32 %v989, 1.0
    %v992 = vadd.f32 %v990, 1.0
    %v993 = vmul.f32 %v991, 0.5
    %v994 = vmul.f32 %v992, 0.5
    %v995 = vmul.f32 %v973, %v993
    %v996 = vmul.f32 %v976, %v994
    %v997 = vpack.c.bf16 %v996, %v995
    %v998 = vld [vmem:[%s12] sm:$0xf]
    %v999 = vld [vmem:[%s12 + $0x4] sm:$0xf]
    %v1000 = vld [vmem:[%s12 + $0x8] sm:$0xf]
    %v1001 = vld [vmem:[%s12 + $0xc] sm:$0xf]
    %v1002 = vld [vmem:[%s12 + $0x10] sm:$0xf]
    %v1003 = vld [vmem:[%s12 + $0x14] sm:$0xf]
    %v1004 = vld [vmem:[%s12 + $0x18] sm:$0xf]
    %v1005 = vld [vmem:[%s12 + $0x1c] sm:$0xf]
    %v1006 = vld [vmem:[#allocation14] sm:$0x1]
    %v1008 = vlaneseq
    %v1009 = vshrl.u32 %v1008, 7
    %v1010 = vsub.s32 0, %v1009
    %v1011 = vrot.slane %v1006, %v1010
    %v1021 = vunpack.c.l.b16 %v998
    %v1022 = vunpack.c.l.b16 %v999
    %v1023 = vunpack.c.l.b16 %v1000
    %v1024 = vunpack.c.l.b16 %v1001
    %v1025 = vunpack.c.l.b16 %v1002
    %v1026 = vunpack.c.l.b16 %v1003
    %v1027 = vunpack.c.l.b16 %v1004
    %v1028 = vunpack.c.l.b16 %v1005
    %v1029 = vpack.c.b16 %v1022, %v1021
    %v1030 = vpack.c.b16 %v1024, %v1023
    %v1031 = vpack.c.b16 %v1026, %v1025
    %v1032 = vpack.c.b16 %v1028, %v1027
    %vm1037 = vcmask 523264
    %v1039 = vsel %vm1037, %v997, 0
    %1041 = vmatprep.subr.bf16.mxu0 0
    %1042 = vmatpush1.bf16.msra.mxu0 %v1029
    %1043 = vmatprep.subr.bf16.mxu0 0
    %1044 = vmatpush1.bf16.msra.mxu0 %v1030
    %1045 = vmatprep.subr.bf16.mxu0 0
    %1046 = vmatpush1.bf16.msra.mxu0 %v1031
    %1047 = vmatprep.subr.bf16.mxu0 0
    %1048 = vmatpush1.bf16.msra.mxu0 %v1032
    %1049 = vmatprep.subr.bf16.mxu0 0
    %1050 = vmatpush1.bf16.msra.mxu0 0
    %1051 = vmatprep.subr.bf16.mxu0 0
    %1052 = vmatpush1.bf16.msra.mxu0 0
    %1053 = vmatprep.subr.bf16.mxu0 0
    %1054 = vmatpush1.bf16.msra.mxu0 0
    %1055 = vmatprep.subr.bf16.mxu0 0
    %1056 = vmatpush1.bf16.msra.mxu0 0
    %1057 = vmatprep.subr.bf16.mxu0 0
    %1058 = vmatpush1.bf16.msra.mxu0 0
    %1059 = vmatprep.subr.bf16.mxu0 0
    %1060 = vmatpush1.bf16.msra.mxu0 0
    %1061 = vmatprep.subr.bf16.mxu0 0
    %1062 = vmatpush1.bf16.msra.mxu0 0
    %1063 = vmatprep.subr.bf16.mxu0 0
    %1064 = vmatpush1.bf16.msra.mxu0 0
    %1065 = vmatprep.subr.bf16.mxu0 0
    %1066 = vmatpush1.bf16.msra.mxu0 0
    %1067 = vmatprep.subr.bf16.mxu0 0
    %1068 = vmatpush1.bf16.msra.mxu0 0
    %1069 = vmatprep.subr.bf16.mxu0 0
    %1070 = vmatpush1.bf16.msra.mxu0 0
    %1071 = vmatprep.subr.bf16.mxu0 0
    %1072 = vmatpush1.bf16.msra.mxu0 0
    %1073 = vmatprep.mubr.bf16.mxu0 0
    %1074 = vmatmul.mubr.bf16.gmra.mrb[0].mxu0 %v1039
    %v1075 = vpop.f32.mrb[0].mxu0
    %v1076 = vadd.f32 %v1011, %v1075
    %v1077 = vpop.f32.mrb[0].mxu0
    %v1078 = vpop.f32.mrb[0].mxu0
    %v1079 = vadd.f32 %v1011, %v1078
    %v1080 = vpop.f32.mrb[0].mxu0
    %1081 = vdwg.mxu0
    %v1082 = vadd.f32 %v909, %v1076
    %v1083 = vadd.f32 %v910, %v1079
    %v1084 = vld [vmem:[%s14] sm:$0x1]
    %v1085 = vld [vmem:[%s15] sm:$0x1]
    %v1086 = vsel %vm179, %v1082, 0.0
    %1087 = vadd.xlane.f32.xlu0 %v1086
    %v1088 = vpop.xlane.xlu0 %1087
    %v1089 = vsel %vm179, %v1083, 0.0
    %1090 = vadd.xlane.f32.xlu0 %v1089
    %v1091 = vpop.xlane.xlu0 %1090
    %v1092 = vmul.f32 %v1088, %v186
    %v1093 = vmul.f32 %v1091, %v186
    %v1094 = vsub.f32 %v1082, %v1092
    %v1095 = vsub.f32 %v1083, %v1093
    %v1096 = vmul.f32 %v1094, %v1094
    %v1097 = vmul.f32 %v1095, %v1095
    %v1098 = vsel %vm179, %v1096, 0.0
    %1099 = vadd.xlane.f32.xlu0 %v1098
    %v1100 = vpop.xlane.xlu0 %1099
    %v1101 = vsel %vm179, %v1097, 0.0
    %1102 = vadd.xlane.f32.xlu0 %v1101
    %v1103 = vpop.xlane.xlu0 %1102
    %v1104 = vmul.f32 %v1100, %v186
    %v1105 = vmul.f32 %v1103, %v186
    %v1106 = vadd.f32 %v1104, 1e-12
    %v1107 = vadd.f32 %v1105, 1e-12
    %v1108 = vrsqrt.pop %v1106
    %v1109 = vrsqrt.pop %v1107
    %v1110 = vmul.f32 %v1094, %v1108
    %v1111 = vmul.f32 %v1095, %v1109
    %v1113 = vlaneseq
    %v1114 = vshrl.u32 %v1113, 7
    %v1115 = vsub.s32 0, %v1114
    %v1116 = vrot.slane %v1084, %v1115
    %v1118 = vmul.f32 %v1110, %v1116
    %v1119 = vmul.f32 %v1111, %v1116
    %v1121 = vlaneseq
    %v1122 = vshrl.u32 %v1121, 7
    %v1123 = vsub.s32 0, %v1122
    %v1124 = vrot.slane %v1085, %v1123
    %v1126 = vadd.f32 %v1118, %v1124
    %v1127 = vadd.f32 %v1119, %v1124
    %v1128 = vpack.c.bf16 %v1127, %v1126
    %s1129 = scalar_lea.vmem %s4, 16
    %v1130 = vld [vmem:[%s1129] sm:$0xf]
    %v1131 = vld [vmem:[%s1129 + $0x4] sm:$0xf]
    %v1132 = vld [vmem:[%s1129 + $0x8] sm:$0xf]
    %v1133 = vld [vmem:[%s1129 + $0xc] sm:$0xf]
    %s1134 = scalar_lea.vmem [#allocation7], 1
    %v1135 = vld [vmem:[%s1134] sm:$0x1]
    %v1137 = vlaneseq
    %v1138 = vshrl.u32 %v1137, 7
    %v1139 = vsub.s32 0, %v1138
    %v1140 = vrot.slane %v1135, %v1139
    %v1146 = vunpack.c.l.b16 %v1130
    %v1147 = vunpack.c.l.b16 %v1131
    %v1148 = vunpack.c.l.b16 %v1132
    %v1149 = vunpack.c.l.b16 %v1133
    %v1150 = vpack.c.b16 %v1147, %v1146
    %v1151 = vpack.c.b16 %v1149, %v1148
    %v1155 = vsel %vm179, %v1128, 0
    %1157 = vmatprep.subr.bf16.mxu0 0
    %1158 = vmatpush1.bf16.msra.mxu0 %v1150
    %1159 = vmatprep.subr.bf16.mxu0 0
    %1160 = vmatpush1.bf16.msra.mxu0 %v1151
    %1161 = vmatprep.subr.bf16.mxu0 0
    %1162 = vmatpush1.bf16.msra.mxu0 0
    %1163 = vmatprep.subr.bf16.mxu0 0
    %1164 = vmatpush1.bf16.msra.mxu0 0
    %1165 = vmatprep.subr.bf16.mxu0 0
    %1166 = vmatpush1.bf16.msra.mxu0 0
    %1167 = vmatprep.subr.bf16.mxu0 0
    %1168 = vmatpush1.bf16.msra.mxu0 0
    %1169 = vmatprep.subr.bf16.mxu0 0
    %1170 = vmatpush1.bf16.msra.mxu0 0
    %1171 = vmatprep.subr.bf16.mxu0 0
    %1172 = vmatpush1.bf16.msra.mxu0 0
    %1173 = vmatprep.subr.bf16.mxu0 0
    %1174 = vmatpush1.bf16.msra.mxu0 0
    %1175 = vmatprep.subr.bf16.mxu0 0
    %1176 = vmatpush1.bf16.msra.mxu0 0
    %1177 = vmatprep.subr.bf16.mxu0 0
    %1178 = vmatpush1.bf16.msra.mxu0 0
    %1179 = vmatprep.subr.bf16.mxu0 0
    %1180 = vmatpush1.bf16.msra.mxu0 0
    %1181 = vmatprep.subr.bf16.mxu0 0
    %1182 = vmatpush1.bf16.msra.mxu0 0
    %1183 = vmatprep.subr.bf16.mxu0 0
    %1184 = vmatpush1.bf16.msra.mxu0 0
    %1185 = vmatprep.subr.bf16.mxu0 0
    %1186 = vmatpush1.bf16.msra.mxu0 0
    %1187 = vmatprep.subr.bf16.mxu0 0
    %1188 = vmatpush1.bf16.msra.mxu0 0
    %1189 = vmatprep.mubr.bf16.mxu0 0
    %1190 = vmatmul.mubr.bf16.gmra.mrb[0].mxu0 %v1155
    %v1191 = vpop.f32.mrb[0].mxu0
    %v1192 = vadd.f32 %v1140, %v1191
    %v1193 = vpop.f32.mrb[0].mxu0
    %v1194 = vpop.f32.mrb[0].mxu0
    %v1195 = vadd.f32 %v1140, %v1194
    %v1196 = vpop.f32.mrb[0].mxu0
    %1197 = vdwg.mxu0
    %v1198 = vpack.c.bf16 %v1195, %v1192
    %s1199 = scalar_lea.vmem %s6, 16
    %v1200 = vld [vmem:[%s1199] sm:$0xf]
    %v1201 = vld [vmem:[%s1199 + $0x4] sm:$0xf]
    %v1202 = vld [vmem:[%s1199 + $0x8] sm:$0xf]
    %v1203 = vld [vmem:[%s1199 + $0xc] sm:$0xf]
    %v1205 = vunpack.c.l.b16 %v1198
    %v1206 = vunpack.c.h.b16 %v1198
    %v1207 = vpack.c.b16 %v1205, %v1205
    %v1208 = vpack.c.b16 %v1206, %v1206
    %1209 = vrot.lane.b32.xlu0 %v1207, 96
    %v1210 = vpop.permute.xlu0 %1209
    %v1212 = vsel %vm317, %v1207, 0
    %v1215 = vsel %vm317, %v1210, 0
    %1217 = vmatprep.subr.bf16.mxu0 0
    %1218 = vmatpush1.bf16.xpose.msra.mxu0 %v1215
    %1219 = vmatprep.subr.bf16.mxu0 0
    %1220 = vmatpush1.bf16.xpose.msra.mxu0 0
    %1221 = vmatprep.subr.bf16.mxu0 0
    %1222 = vmatpush1.bf16.xpose.msra.mxu0 0
    %1223 = vmatprep.subr.bf16.mxu0 0
    %1224 = vmatpush1.bf16.xpose.msra.mxu0 0
    %1225 = vmatprep.subr.bf16.mxu0 0
    %1226 = vmatpush1.bf16.xpose.msra.mxu0 0
    %1227 = vmatprep.subr.bf16.mxu0 0
    %1228 = vmatpush1.bf16.xpose.msra.mxu0 0
    %1229 = vmatprep.subr.bf16.mxu0 0
    %1230 = vmatpush1.bf16.xpose.msra.mxu0 0
    %1231 = vmatprep.subr.bf16.mxu0 0
    %1232 = vmatpush1.bf16.xpose.msra.mxu0 0
    %1233 = vmatprep.subr.bf16.mxu0 0
    %1234 = vmatpush1.bf16.xpose.msra.mxu0 0
    %1235 = vmatprep.subr.bf16.mxu0 0
    %1236 = vmatpush1.bf16.xpose.msra.mxu0 0
    %1237 = vmatprep.subr.bf16.mxu0 0
    %1238 = vmatpush1.bf16.xpose.msra.mxu0 0
    %1239 = vmatprep.subr.bf16.mxu0 0
    %1240 = vmatpush1.bf16.xpose.msra.mxu0 0
    %1241 = vmatprep.subr.bf16.mxu0 0
    %1242 = vmatpush1.bf16.xpose.msra.mxu0 0
    %1243 = vmatprep.subr.bf16.mxu0 0
    %1244 = vmatpush1.bf16.xpose.msra.mxu0 0
    %1245 = vmatprep.subr.bf16.mxu0 0
    %1246 = vmatpush1.bf16.xpose.msra.mxu0 0
    %1247 = vmatprep.subr.bf16.mxu0 0
    %1248 = vmatpush1.bf16.xpose.msra.mxu0 0
    %1249 = vmatprep.mubr.bf16.mxu0 0
    %1250 = vmatmul.mubr.bf16.gmra.mrb[0].mxu0 %v1212
    %v1251 = vpop.f32.mrb[0].mxu0
    %v1252 = vadd.f32 %v230, %v1251
    %v1253 = vpop.f32.mrb[0].mxu0
    %v1254 = vpop.f32.mrb[0].mxu0
    %v1255 = vpop.f32.mrb[0].mxu0
    %1256 = vdwg.mxu0
    %1257 = vrot.lane.b32.xlu0 %v1208, 96
    %v1258 = vpop.permute.xlu0 %1257
    %v1260 = vsel %vm317, %v1208, 0
    %v1263 = vsel %vm317, %v1258, 0
    %1265 = vmatprep.subr.bf16.mxu0 0
    %1266 = vmatpush1.bf16.xpose.msra.mxu0 %v1263
    %1267 = vmatprep.subr.bf16.mxu0 0
    %1268 = vmatpush1.bf16.xpose.msra.mxu0 0
    %1269 = vmatprep.subr.bf16.mxu0 0
    %1270 = vmatpush1.bf16.xpose.msra.mxu0 0
    %1271 = vmatprep.subr.bf16.mxu0 0
    %1272 = vmatpush1.bf16.xpose.msra.mxu0 0
    %1273 = vmatprep.subr.bf16.mxu0 0
    %1274 = vmatpush1.bf16.xpose.msra.mxu0 0
    %1275 = vmatprep.subr.bf16.mxu0 0
    %1276 = vmatpush1.bf16.xpose.msra.mxu0 0
    %1277 = vmatprep.subr.bf16.mxu0 0
    %1278 = vmatpush1.bf16.xpose.msra.mxu0 0
    %1279 = vmatprep.subr.bf16.mxu0 0
    %1280 = vmatpush1.bf16.xpose.msra.mxu0 0
    %1281 = vmatprep.subr.bf16.mxu0 0
    %1282 = vmatpush1.bf16.xpose.msra.mxu0 0
    %1283 = vmatprep.subr.bf16.mxu0 0
    %1284 = vmatpush1.bf16.xpose.msra.mxu0 0
    %1285 = vmatprep.subr.bf16.mxu0 0
    %1286 = vmatpush1.bf16.xpose.msra.mxu0 0
    %1287 = vmatprep.subr.bf16.mxu0 0
    %1288 = vmatpush1.bf16.xpose.msra.mxu0 0
    %1289 = vmatprep.subr.bf16.mxu0 0
    %1290 = vmatpush1.bf16.xpose.msra.mxu0 0
    %1291 = vmatprep.subr.bf16.mxu0 0
    %1292 = vmatpush1.bf16.xpose.msra.mxu0 0
    %1293 = vmatprep.subr.bf16.mxu0 0
    %1294 = vmatpush1.bf16.xpose.msra.mxu0 0
    %1295 = vmatprep.subr.bf16.mxu0 0
    %1296 = vmatpush1.bf16.xpose.msra.mxu0 0
    %1297 = vmatprep.mubr.bf16.mxu0 0
    %1298 = vmatmul.mubr.bf16.gmra.mrb[0].mxu0 %v1260
    %v1299 = vpop.f32.mrb[0].mxu0
    %v1300 = vadd.f32 %v234, %v1299
    %v1301 = vpop.f32.mrb[0].mxu0
    %v1302 = vpop.f32.mrb[0].mxu0
    %v1303 = vpop.f32.mrb[0].mxu0
    %1304 = vdwg.mxu0
    %v1305 = vsel %vm412, %v1252, -inf
    %1306 = vmax.xlane.f32.xlu0 %v1305
    %v1307 = vpop.xlane.xlu0 %1306
    %v1308 = vsel %vm412, %v1300, -inf
    %1309 = vmax.xlane.f32.xlu0 %v1308
    %v1310 = vpop.xlane.xlu0 %1309
    %v1311 = vsub.f32 %v1252, %v1307
    %v1312 = vsub.f32 %v1300, %v1310
    %v1313 = vmul.f32 %v1311, 1.442695
    %v1314 = vpow.pop %v1313
    %v1315 = vmul.f32 %v1312, 1.442695
    %v1316 = vpow.pop %v1315
    %v1317 = vsel %vm412, %v1314, 0.0
    %1318 = vadd.xlane.f32.xlu0 %v1317
    %v1319 = vpop.xlane.xlu0 %1318
    %v1320 = vsel %vm412, %v1316, 0.0
    %1321 = vadd.xlane.f32.xlu0 %v1320
    %v1322 = vpop.xlane.xlu0 %1321
    %v1323 = vrcp.pop %v1319
    %v1324 = vrcp.pop %v1322
    %v1325 = vmul.f32 %v1314, %v1323
    %v1326 = vmul.f32 %v1316, %v1324
    %v1327 = vpack.c.bf16 %v1325, %v1325
    %v1328 = vpack.c.bf16 %v1326, %v1326
    %1329 = vrot.lane.b32.xlu0 %v1207, 64
    %v1330 = vpop.permute.xlu0 %1329
    %v1332 = vsel %vm412, %v1327, 0
    %v1335 = vsel %vm442, %v1330, 0
    %1337 = vmatprep.subr.bf16.mxu0 0
    %1338 = vmatpush1.bf16.msra.mxu0 %v1335
    %1339 = vmatprep.subr.bf16.mxu0 0
    %1340 = vmatpush1.bf16.msra.mxu0 0
    %1341 = vmatprep.subr.bf16.mxu0 0
    %1342 = vmatpush1.bf16.msra.mxu0 0
    %1343 = vmatprep.subr.bf16.mxu0 0
    %1344 = vmatpush1.bf16.msra.mxu0 0
    %1345 = vmatprep.subr.bf16.mxu0 0
    %1346 = vmatpush1.bf16.msra.mxu0 0
    %1347 = vmatprep.subr.bf16.mxu0 0
    %1348 = vmatpush1.bf16.msra.mxu0 0
    %1349 = vmatprep.subr.bf16.mxu0 0
    %1350 = vmatpush1.bf16.msra.mxu0 0
    %1351 = vmatprep.subr.bf16.mxu0 0
    %1352 = vmatpush1.bf16.msra.mxu0 0
    %1353 = vmatprep.subr.bf16.mxu0 0
    %1354 = vmatpush1.bf16.msra.mxu0 0
    %1355 = vmatprep.subr.bf16.mxu0 0
    %1356 = vmatpush1.bf16.msra.mxu0 0
    %1357 = vmatprep.subr.bf16.mxu0 0
    %1358 = vmatpush1.bf16.msra.mxu0 0
    %1359 = vmatprep.subr.bf16.mxu0 0
    %1360 = vmatpush1.bf16.msra.mxu0 0
    %1361 = vmatprep.subr.bf16.mxu0 0
    %1362 = vmatpush1.bf16.msra.mxu0 0
    %1363 = vmatprep.subr.bf16.mxu0 0
    %1364 = vmatpush1.bf16.msra.mxu0 0
    %1365 = vmatprep.subr.bf16.mxu0 0
    %1366 = vmatpush1.bf16.msra.mxu0 0
    %1367 = vmatprep.subr.bf16.mxu0 0
    %1368 = vmatpush1.bf16.msra.mxu0 0
    %1369 = vmatprep.mubr.bf16.mxu0 0
    %1370 = vmatmul.mubr.bf16.gmra.mrb[0].mxu0 %v1332
    %v1371 = vpop.f32.mrb[0].mxu0
    %v1372 = vadd.f32 0.0, %v1371
    %v1373 = vpop.f32.mrb[0].mxu0
    %v1374 = vpop.f32.mrb[0].mxu0
    %v1375 = vpop.f32.mrb[0].mxu0
    %1376 = vdwg.mxu0
    %1377 = vrot.lane.b32.xlu0 %v1208, 64
    %v1378 = vpop.permute.xlu0 %1377
    %v1380 = vsel %vm412, %v1328, 0
    %v1383 = vsel %vm442, %v1378, 0
    %1385 = vmatprep.subr.bf16.mxu0 0
    %1386 = vmatpush1.bf16.msra.mxu0 %v1383
    %1387 = vmatprep.subr.bf16.mxu0 0
    %1388 = vmatpush1.bf16.msra.mxu0 0
    %1389 = vmatprep.subr.bf16.mxu0 0
    %1390 = vmatpush1.bf16.msra.mxu0 0
    %1391 = vmatprep.subr.bf16.mxu0 0
    %1392 = vmatpush1.bf16.msra.mxu0 0
    %1393 = vmatprep.subr.bf16.mxu0 0
    %1394 = vmatpush1.bf16.msra.mxu0 0
    %1395 = vmatprep.subr.bf16.mxu0 0
    %1396 = vmatpush1.bf16.msra.mxu0 0
    %1397 = vmatprep.subr.bf16.mxu0 0
    %1398 = vmatpush1.bf16.msra.mxu0 0
    %1399 = vmatprep.subr.bf16.mxu0 0
    %1400 = vmatpush1.bf16.msra.mxu0 0
    %1401 = vmatprep.subr.bf16.mxu0 0
    %1402 = vmatpush1.bf16.msra.mxu0 0
    %1403 = vmatprep.subr.bf16.mxu0 0
    %1404 = vmatpush1.bf16.msra.mxu0 0
    %1405 = vmatprep.subr.bf16.mxu0 0
    %1406 = vmatpush1.bf16.msra.mxu0 0
    %1407 = vmatprep.subr.bf16.mxu0 0
    %1408 = vmatpush1.bf16.msra.mxu0 0
    %1409 = vmatprep.subr.bf16.mxu0 0
    %1410 = vmatpush1.bf16.msra.mxu0 0
    %1411 = vmatprep.subr.bf16.mxu0 0
    %1412 = vmatpush1.bf16.msra.mxu0 0
    %1413 = vmatprep.subr.bf16.mxu0 0
    %1414 = vmatpush1.bf16.msra.mxu0 0
    %1415 = vmatprep.subr.bf16.mxu0 0
    %1416 = vmatpush1.bf16.msra.mxu0 0
    %1417 = vmatprep.mubr.bf16.mxu0 0
    %1418 = vmatmul.mubr.bf16.gmra.mrb[0].mxu0 %v1380
    %v1419 = vpop.f32.mrb[0].mxu0
    %v1420 = vadd.f32 0.0, %v1419
    %v1421 = vpop.f32.mrb[0].mxu0
    %v1422 = vpop.f32.mrb[0].mxu0
    %v1423 = vpop.f32.mrb[0].mxu0
    %1424 = vdwg.mxu0
    %v1425 = vpack.c.bf16 %v1420, %v1372
    %1426 = vrot.lane.b32.xlu0 %v1207, 112
    %v1427 = vpop.permute.xlu0 %1426
    %1428 = vrot.lane.b32.xlu0 %v1207, 80
    %v1429 = vpop.permute.xlu0 %1428
    %v1431 = vsel %vm317, %v1427, 0
    %v1434 = vsel %vm317, %v1429, 0
    %1436 = vmatprep.subr.bf16.mxu0 0
    %1437 = vmatpush1.bf16.xpose.msra.mxu0 %v1434
    %1438 = vmatprep.subr.bf16.mxu0 0
    %1439 = vmatpush1.bf16.xpose.msra.mxu0 0
    %1440 = vmatprep.subr.bf16.mxu0 0
    %1441 = vmatpush1.bf16.xpose.msra.mxu0 0
    %1442 = vmatprep.subr.bf16.mxu0 0
    %1443 = vmatpush1.bf16.xpose.msra.mxu0 0
    %1444 = vmatprep.subr.bf16.mxu0 0
    %1445 = vmatpush1.bf16.xpose.msra.mxu0 0
    %1446 = vmatprep.subr.bf16.mxu0 0
    %1447 = vmatpush1.bf16.xpose.msra.mxu0 0
    %1448 = vmatprep.subr.bf16.mxu0 0
    %1449 = vmatpush1.bf16.xpose.msra.mxu0 0
    %1450 = vmatprep.subr.bf16.mxu0 0
    %1451 = vmatpush1.bf16.xpose.msra.mxu0 0
    %1452 = vmatprep.subr.bf16.mxu0 0
    %1453 = vmatpush1.bf16.xpose.msra.mxu0 0
    %1454 = vmatprep.subr.bf16.mxu0 0
    %1455 = vmatpush1.bf16.xpose.msra.mxu0 0
    %1456 = vmatprep.subr.bf16.mxu0 0
    %1457 = vmatpush1.bf16.xpose.msra.mxu0 0
    %1458 = vmatprep.subr.bf16.mxu0 0
    %1459 = vmatpush1.bf16.xpose.msra.mxu0 0
    %1460 = vmatprep.subr.bf16.mxu0 0
    %1461 = vmatpush1.bf16.xpose.msra.mxu0 0
    %1462 = vmatprep.subr.bf16.mxu0 0
    %1463 = vmatpush1.bf16.xpose.msra.mxu0 0
    %1464 = vmatprep.subr.bf16.mxu0 0
    %1465 = vmatpush1.bf16.xpose.msra.mxu0 0
    %1466 = vmatprep.subr.bf16.mxu0 0
    %1467 = vmatpush1.bf16.xpose.msra.mxu0 0
    %1468 = vmatprep.mubr.bf16.mxu0 0
    %1469 = vmatmul.mubr.bf16.gmra.mrb[0].mxu0 %v1431
    %v1470 = vpop.f32.mrb[0].mxu0
    %v1471 = vadd.f32 %v230, %v1470
    %v1472 = vpop.f32.mrb[0].mxu0
    %v1473 = vpop.f32.mrb[0].mxu0
    %v1474 = vpop.f32.mrb[0].mxu0
    %1475 = vdwg.mxu0
    %1476 = vrot.lane.b32.xlu0 %v1208, 112
    %v1477 = vpop.permute.xlu0 %1476
    %1478 = vrot.lane.b32.xlu0 %v1208, 80
    %v1479 = vpop.permute.xlu0 %1478
    %v1481 = vsel %vm317, %v1477, 0
    %v1484 = vsel %vm317, %v1479, 0
    %1486 = vmatprep.subr.bf16.mxu0 0
    %1487 = vmatpush1.bf16.xpose.msra.mxu0 %v1484
    %1488 = vmatprep.subr.bf16.mxu0 0
    %1489 = vmatpush1.bf16.xpose.msra.mxu0 0
    %1490 = vmatprep.subr.bf16.mxu0 0
    %1491 = vmatpush1.bf16.xpose.msra.mxu0 0
    %1492 = vmatprep.subr.bf16.mxu0 0
    %1493 = vmatpush1.bf16.xpose.msra.mxu0 0
    %1494 = vmatprep.subr.bf16.mxu0 0
    %1495 = vmatpush1.bf16.xpose.msra.mxu0 0
    %1496 = vmatprep.subr.bf16.mxu0 0
    %1497 = vmatpush1.bf16.xpose.msra.mxu0 0
    %1498 = vmatprep.subr.bf16.mxu0 0
    %1499 = vmatpush1.bf16.xpose.msra.mxu0 0
    %1500 = vmatprep.subr.bf16.mxu0 0
    %1501 = vmatpush1.bf16.xpose.msra.mxu0 0
    %1502 = vmatprep.subr.bf16.mxu0 0
    %1503 = vmatpush1.bf16.xpose.msra.mxu0 0
    %1504 = vmatprep.subr.bf16.mxu0 0
    %1505 = vmatpush1.bf16.xpose.msra.mxu0 0
    %1506 = vmatprep.subr.bf16.mxu0 0
    %1507 = vmatpush1.bf16.xpose.msra.mxu0 0
    %1508 = vmatprep.subr.bf16.mxu0 0
    %1509 = vmatpush1.bf16.xpose.msra.mxu0 0
    %1510 = vmatprep.subr.bf16.mxu0 0
    %1511 = vmatpush1.bf16.xpose.msra.mxu0 0
    %1512 = vmatprep.subr.bf16.mxu0 0
    %1513 = vmatpush1.bf16.xpose.msra.mxu0 0
    %1514 = vmatprep.subr.bf16.mxu0 0
    %1515 = vmatpush1.bf16.xpose.msra.mxu0 0
    %1516 = vmatprep.subr.bf16.mxu0 0
    %1517 = vmatpush1.bf16.xpose.msra.mxu0 0
    %1518 = vmatprep.mubr.bf16.mxu0 0
    %1519 = vmatmul.mubr.bf16.gmra.mrb[0].mxu0 %v1481
    %v1520 = vpop.f32.mrb[0].mxu0
    %v1521 = vadd.f32 %v234, %v1520
    %v1522 = vpop.f32.mrb[0].mxu0
    %v1523 = vpop.f32.mrb[0].mxu0
    %v1524 = vpop.f32.mrb[0].mxu0
    %1525 = vdwg.mxu0
    %v1526 = vsel %vm412, %v1471, -inf
    %1527 = vmax.xlane.f32.xlu0 %v1526
    %v1528 = vpop.xlane.xlu0 %1527
    %v1529 = vsel %vm412, %v1521, -inf
    %1530 = vmax.xlane.f32.xlu0 %v1529
    %v1531 = vpop.xlane.xlu0 %1530
    %v1532 = vsub.f32 %v1471, %v1528
    %v1533 = vsub.f32 %v1521, %v1531
    %v1534 = vmul.f32 %v1532, 1.442695
    %v1535 = vpow.pop %v1534
    %v1536 = vmul.f32 %v1533, 1.442695
    %v1537 = vpow.pop %v1536
    %v1538 = vsel %vm412, %v1535, 0.0
    %1539 = vadd.xlane.f32.xlu0 %v1538
    %v1540 = vpop.xlane.xlu0 %1539
    %v1541 = vsel %vm412, %v1537, 0.0
    %1542 = vadd.xlane.f32.xlu0 %v1541
    %v1543 = vpop.xlane.xlu0 %1542
    %v1544 = vrcp.pop %v1540
    %v1545 = vrcp.pop %v1543
    %v1546 = vmul.f32 %v1535, %v1544
    %v1547 = vmul.f32 %v1537, %v1545
    %v1548 = vpack.c.bf16 %v1546, %v1546
    %v1549 = vpack.c.bf16 %v1547, %v1547
    %1550 = vrot.lane.b32.xlu0 %v1207, 48
    %v1551 = vpop.permute.xlu0 %1550
    %v1553 = vsel %vm412, %v1548, 0
    %v1556 = vsel %vm442, %v1551, 0
    %1558 = vmatprep.subr.bf16.mxu0 0
    %1559 = vmatpush1.bf16.msra.mxu0 %v1556
    %1560 = vmatprep.subr.bf16.mxu0 0
    %1561 = vmatpush1.bf16.msra.mxu0 0
    %1562 = vmatprep.subr.bf16.mxu0 0
    %1563 = vmatpush1.bf16.msra.mxu0 0
    %1564 = vmatprep.subr.bf16.mxu0 0
    %1565 = vmatpush1.bf16.msra.mxu0 0
    %1566 = vmatprep.subr.bf16.mxu0 0
    %1567 = vmatpush1.bf16.msra.mxu0 0
    %1568 = vmatprep.subr.bf16.mxu0 0
    %1569 = vmatpush1.bf16.msra.mxu0 0
    %1570 = vmatprep.subr.bf16.mxu0 0
    %1571 = vmatpush1.bf16.msra.mxu0 0
    %1572 = vmatprep.subr.bf16.mxu0 0
    %1573 = vmatpush1.bf16.msra.mxu0 0
    %1574 = vmatprep.subr.bf16.mxu0 0
    %1575 = vmatpush1.bf16.msra.mxu0 0
    %1576 = vmatprep.subr.bf16.mxu0 0
    %1577 = vmatpush1.bf16.msra.mxu0 0
    %1578 = vmatprep.subr.bf16.mxu0 0
    %1579 = vmatpush1.bf16.msra.mxu0 0
    %1580 = vmatprep.subr.bf16.mxu0 0
    %1581 = vmatpush1.bf16.msra.mxu0 0
    %1582 = vmatprep.subr.bf16.mxu0 0
    %1583 = vmatpush1.bf16.msra.mxu0 0
    %1584 = vmatprep.subr.bf16.mxu0 0
    %1585 = vmatpush1.bf16.msra.mxu0 0
    %1586 = vmatprep.subr.bf16.mxu0 0
    %1587 = vmatpush1.bf16.msra.mxu0 0
    %1588 = vmatprep.subr.bf16.mxu0 0
    %1589 = vmatpush1.bf16.msra.mxu0 0
    %1590 = vmatprep.mubr.bf16.mxu0 0
    %1591 = vmatmul.mubr.bf16.gmra.mrb[0].mxu0 %v1553
    %v1592 = vpop.f32.mrb[0].mxu0
    %v1593 = vadd.f32 0.0, %v1592
    %v1594 = vpop.f32.mrb[0].mxu0
    %v1595 = vpop.f32.mrb[0].mxu0
    %v1596 = vpop.f32.mrb[0].mxu0
    %1597 = vdwg.mxu0
    %1598 = vrot.lane.b32.xlu0 %v1208, 48
    %v1599 = vpop.permute.xlu0 %1598
    %v1601 = vsel %vm412, %v1549, 0
    %v1604 = vsel %vm442, %v1599, 0
    %1606 = vmatprep.subr.bf16.mxu0 0
    %1607 = vmatpush1.bf16.msra.mxu0 %v1604
    %1608 = vmatprep.subr.bf16.mxu0 0
    %1609 = vmatpush1.bf16.msra.mxu0 0
    %1610 = vmatprep.subr.bf16.mxu0 0
    %1611 = vmatpush1.bf16.msra.mxu0 0
    %1612 = vmatprep.subr.bf16.mxu0 0
    %1613 = vmatpush1.bf16.msra.mxu0 0
    %1614 = vmatprep.subr.bf16.mxu0 0
    %1615 = vmatpush1.bf16.msra.mxu0 0
    %1616 = vmatprep.subr.bf16.mxu0 0
    %1617 = vmatpush1.bf16.msra.mxu0 0
    %1618 = vmatprep.subr.bf16.mxu0 0
    %1619 = vmatpush1.bf16.msra.mxu0 0
    %1620 = vmatprep.subr.bf16.mxu0 0
    %1621 = vmatpush1.bf16.msra.mxu0 0
    %1622 = vmatprep.subr.bf16.mxu0 0
    %1623 = vmatpush1.bf16.msra.mxu0 0
    %1624 = vmatprep.subr.bf16.mxu0 0
    %1625 = vmatpush1.bf16.msra.mxu0 0
    %1626 = vmatprep.subr.bf16.mxu0 0
    %1627 = vmatpush1.bf16.msra.mxu0 0
    %1628 = vmatprep.subr.bf16.mxu0 0
    %1629 = vmatpush1.bf16.msra.mxu0 0
    %1630 = vmatprep.subr.bf16.mxu0 0
    %1631 = vmatpush1.bf16.msra.mxu0 0
    %1632 = vmatprep.subr.bf16.mxu0 0
    %1633 = vmatpush1.bf16.msra.mxu0 0
    %1634 = vmatprep.subr.bf16.mxu0 0
    %1635 = vmatpush1.bf16.msra.mxu0 0
    %1636 = vmatprep.subr.bf16.mxu0 0
    %1637 = vmatpush1.bf16.msra.mxu0 0
    %1638 = vmatprep.mubr.bf16.mxu0 0
    %1639 = vmatmul.mubr.bf16.gmra.mrb[0].mxu0 %v1601
    %v1640 = vpop.f32.mrb[0].mxu0
    %v1641 = vadd.f32 0.0, %v1640
    %v1642 = vpop.f32.mrb[0].mxu0
    %v1643 = vpop.f32.mrb[0].mxu0
    %v1644 = vpop.f32.mrb[0].mxu0
    %1645 = vdwg.mxu0
    %v1646 = vpack.c.bf16 %v1641, %v1593
    %v1649 = vunpack.c.l.b16 %v1202
    %v1650 = vunpack.c.l.b16 %v1203
    %v1651 = vpack.c.b16 %v1650, %v1649
    %v1654 = vsel %vm317, %v1646, 0
    %1656 = vmatprep.subr.bf16.mxu0 0
    %1657 = vmatpush1.bf16.msra.mxu0 %v1651
    %1658 = vmatprep.subr.bf16.mxu0 0
    %1659 = vmatpush1.bf16.msra.mxu0 0
    %1660 = vmatprep.subr.bf16.mxu0 0
    %1661 = vmatpush1.bf16.msra.mxu0 0
    %1662 = vmatprep.subr.bf16.mxu0 0
    %1663 = vmatpush1.bf16.msra.mxu0 0
    %1664 = vmatprep.subr.bf16.mxu0 0
    %1665 = vmatpush1.bf16.msra.mxu0 0
    %1666 = vmatprep.subr.bf16.mxu0 0
    %1667 = vmatpush1.bf16.msra.mxu0 0
    %1668 = vmatprep.subr.bf16.mxu0 0
    %1669 = vmatpush1.bf16.msra.mxu0 0
    %1670 = vmatprep.subr.bf16.mxu0 0
    %1671 = vmatpush1.bf16.msra.mxu0 0
    %1672 = vmatprep.subr.bf16.mxu0 0
    %1673 = vmatpush1.bf16.msra.mxu0 0
    %1674 = vmatprep.subr.bf16.mxu0 0
    %1675 = vmatpush1.bf16.msra.mxu0 0
    %1676 = vmatprep.subr.bf16.mxu0 0
    %1677 = vmatpush1.bf16.msra.mxu0 0
    %1678 = vmatprep.subr.bf16.mxu0 0
    %1679 = vmatpush1.bf16.msra.mxu0 0
    %1680 = vmatprep.subr.bf16.mxu0 0
    %1681 = vmatpush1.bf16.msra.mxu0 0
    %1682 = vmatprep.subr.bf16.mxu0 0
    %1683 = vmatpush1.bf16.msra.mxu0 0
    %1684 = vmatprep.subr.bf16.mxu0 0
    %1685 = vmatpush1.bf16.msra.mxu0 0
    %1686 = vmatprep.subr.bf16.mxu0 0
    %1687 = vmatpush1.bf16.msra.mxu0 0
    %1688 = vmatprep.mubr.bf16.mxu0 0
    %1689 = vmatmul.mubr.bf16.gmra.mrb[0].mxu0 %v1654
    %v1690 = vpop.f32.mrb[0].mxu0
    %v1691 = vadd.f32 0.0, %v1690
    %v1692 = vpop.f32.mrb[0].mxu0
    %v1693 = vpop.f32.mrb[0].mxu0
    %v1694 = vadd.f32 0.0, %v1693
    %v1695 = vpop.f32.mrb[0].mxu0
    %1696 = vdwg.mxu0
    %v1699 = vunpack.c.l.b16 %v1200
    %v1700 = vunpack.c.l.b16 %v1201
    %v1701 = vpack.c.b16 %v1700, %v1699
    %v1704 = vsel %vm317, %v1425, 0
    %1706 = vmatprep.subr.bf16.mxu0 0
    %1707 = vmatpush1.bf16.msra.mxu0 %v1701
    %1708 = vmatprep.subr.bf16.mxu0 0
    %1709 = vmatpush1.bf16.msra.mxu0 0
    %1710 = vmatprep.subr.bf16.mxu0 0
    %1711 = vmatpush1.bf16.msra.mxu0 0
    %1712 = vmatprep.subr.bf16.mxu0 0
    %1713 = vmatpush1.bf16.msra.mxu0 0
    %1714 = vmatprep.subr.bf16.mxu0 0
    %1715 = vmatpush1.bf16.msra.mxu0 0
    %1716 = vmatprep.subr.bf16.mxu0 0
    %1717 = vmatpush1.bf16.msra.mxu0 0
    %1718 = vmatprep.subr.bf16.mxu0 0
    %1719 = vmatpush1.bf16.msra.mxu0 0
    %1720 = vmatprep.subr.bf16.mxu0 0
    %1721 = vmatpush1.bf16.msra.mxu0 0
    %1722 = vmatprep.subr.bf16.mxu0 0
    %1723 = vmatpush1.bf16.msra.mxu0 0
    %1724 = vmatprep.subr.bf16.mxu0 0
    %1725 = vmatpush1.bf16.msra.mxu0 0
    %1726 = vmatprep.subr.bf16.mxu0 0
    %1727 = vmatpush1.bf16.msra.mxu0 0
    %1728 = vmatprep.subr.bf16.mxu0 0
    %1729 = vmatpush1.bf16.msra.mxu0 0
    %1730 = vmatprep.subr.bf16.mxu0 0
    %1731 = vmatpush1.bf16.msra.mxu0 0
    %1732 = vmatprep.subr.bf16.mxu0 0
    %1733 = vmatpush1.bf16.msra.mxu0 0
    %1734 = vmatprep.subr.bf16.mxu0 0
    %1735 = vmatpush1.bf16.msra.mxu0 0
    %1736 = vmatprep.subr.bf16.mxu0 0
    %1737 = vmatpush1.bf16.msra.mxu0 0
    %1738 = vmatprep.mubr.bf16.mxu0 0
    %1739 = vmatmul.mubr.bf16.gmra.mrb[0].mxu0 %v1704
    %v1740 = vpop.f32.mrb[0].mxu0
    %v1741 = vadd.f32 %v1691, %v1740
    %v1742 = vpop.f32.mrb[0].mxu0
    %v1743 = vpop.f32.mrb[0].mxu0
    %v1744 = vadd.f32 %v1694, %v1743
    %v1745 = vpop.f32.mrb[0].mxu0
    %1746 = vdwg.mxu0
    %s1747 = scalar_lea.vmem [#allocation8], 1
    %v1748 = vld [vmem:[%s1747] sm:$0x1]
    %v1750 = vlaneseq
    %v1751 = vshrl.u32 %v1750, 7
    %v1752 = vsub.s32 0, %v1751
    %v1753 = vrot.slane %v1748, %v1752
    %v1755 = vadd.f32 %v1741, %v1753
    %v1756 = vadd.f32 %v1744, %v1753
    %v1757 = vadd.f32 %v1126, %v1755
    %v1758 = vadd.f32 %v1127, %v1756
    %s1759 = scalar_lea.vmem [#allocation10], 1
    %v1760 = vld [vmem:[%s1759] sm:$0x1]
    %s1761 = scalar_lea.vmem [#allocation11], 1
    %v1762 = vld [vmem:[%s1761] sm:$0x1]
    %v1763 = vsel %vm179, %v1757, 0.0
    %1764 = vadd.xlane.f32.xlu0 %v1763
    %v1765 = vpop.xlane.xlu0 %1764
    %v1766 = vsel %vm179, %v1758, 0.0
    %1767 = vadd.xlane.f32.xlu0 %v1766
    %v1768 = vpop.xlane.xlu0 %1767
    %v1769 = vmul.f32 %v1765, %v186
    %v1770 = vmul.f32 %v1768, %v186
    %v1771 = vsub.f32 %v1757, %v1769
    %v1772 = vsub.f32 %v1758, %v1770
    %v1773 = vmul.f32 %v1771, %v1771
    %v1774 = vmul.f32 %v1772, %v1772
    %v1775 = vsel %vm179, %v1773, 0.0
    %1776 = vadd.xlane.f32.xlu0 %v1775
    %v1777 = vpop.xlane.xlu0 %1776
    %v1778 = vsel %vm179, %v1774, 0.0
    %1779 = vadd.xlane.f32.xlu0 %v1778
    %v1780 = vpop.xlane.xlu0 %1779
    %v1781 = vmul.f32 %v1777, %v186
    %v1782 = vmul.f32 %v1780, %v186
    %v1783 = vadd.f32 %v1781, 1e-12
    %v1784 = vadd.f32 %v1782, 1e-12
    %v1785 = vrsqrt.pop %v1783
    %v1786 = vrsqrt.pop %v1784
    %v1787 = vmul.f32 %v1771, %v1785
    %v1788 = vmul.f32 %v1772, %v1786
    %v1790 = vlaneseq
    %v1791 = vshrl.u32 %v1790, 7
    %v1792 = vsub.s32 0, %v1791
    %v1793 = vrot.slane %v1760, %v1792
    %v1795 = vmul.f32 %v1787, %v1793
    %v1796 = vmul.f32 %v1788, %v1793
    %v1798 = vlaneseq
    %v1799 = vshrl.u32 %v1798, 7
    %v1800 = vsub.s32 0, %v1799
    %v1801 = vrot.slane %v1762, %v1800
    %v1803 = vadd.f32 %v1795, %v1801
    %v1804 = vadd.f32 %v1796, %v1801
    %v1805 = vpack.c.bf16 %v1804, %v1803
    %s1806 = scalar_lea.vmem %s10, 16
    %v1807 = vld [vmem:[%s1806] sm:$0xf]
    %v1808 = vld [vmem:[%s1806 + $0x4] sm:$0xf]
    %v1809 = vld [vmem:[%s1806 + $0x8] sm:$0xf]
    %v1810 = vld [vmem:[%s1806 + $0xc] sm:$0xf]
    %s1811 = scalar_lea.vmem [#allocation13], 1
    %v1812 = vld [vmem:[%s1811] sm:$0x1]
    %v1814 = vlaneseq
    %v1815 = vshrl.u32 %v1814, 7
    %v1816 = vsub.s32 0, %v1815
    %v1817 = vrot.slane %v1812, %v1816
    %v1823 = vunpack.c.l.b16 %v1807
    %v1824 = vunpack.c.l.b16 %v1808
    %v1825 = vunpack.c.l.b16 %v1809
    %v1826 = vunpack.c.l.b16 %v1810
    %v1827 = vpack.c.b16 %v1824, %v1823
    %v1828 = vpack.c.b16 %v1826, %v1825
    %v1832 = vsel %vm179, %v1805, 0
    %1834 = vmatprep.subr.bf16.mxu0 0
    %1835 = vmatpush1.bf16.msra.mxu0 %v1827
    %1836 = vmatprep.subr.bf16.mxu0 0
    %1837 = vmatpush1.bf16.msra.mxu0 %v1828
    %1838 = vmatprep.subr.bf16.mxu0 0
    %1839 = vmatpush1.bf16.msra.mxu0 0
    %1840 = vmatprep.subr.bf16.mxu0 0
    %1841 = vmatpush1.bf16.msra.mxu0 0
    %1842 = vmatprep.subr.bf16.mxu0 0
    %1843 = vmatpush1.bf16.msra.mxu0 0
    %1844 = vmatprep.subr.bf16.mxu0 0
    %1845 = vmatpush1.bf16.msra.mxu0 0
    %1846 = vmatprep.subr.bf16.mxu0 0
    %1847 = vmatpush1.bf16.msra.mxu0 0
    %1848 = vmatprep.subr.bf16.mxu0 0
    %1849 = vmatpush1.bf16.msra.mxu0 0
    %1850 = vmatprep.subr.bf16.mxu0 0
    %1851 = vmatpush1.bf16.msra.mxu0 0
    %1852 = vmatprep.subr.bf16.mxu0 0
    %1853 = vmatpush1.bf16.msra.mxu0 0
    %1854 = vmatprep.subr.bf16.mxu0 0
    %1855 = vmatpush1.bf16.msra.mxu0 0
    %1856 = vmatprep.subr.bf16.mxu0 0
    %1857 = vmatpush1.bf16.msra.mxu0 0
    %1858 = vmatprep.subr.bf16.mxu0 0
    %1859 = vmatpush1.bf16.msra.mxu0 0
    %1860 = vmatprep.subr.bf16.mxu0 0
    %1861 = vmatpush1.bf16.msra.mxu0 0
    %1862 = vmatprep.subr.bf16.mxu0 0
    %1863 = vmatpush1.bf16.msra.mxu0 0
    %1864 = vmatprep.subr.bf16.mxu0 0
    %1865 = vmatpush1.bf16.msra.mxu0 0
    %1866 = vmatprep.mubr.bf16.mxu0 0
    %1867 = vmatmul.mubr.bf16.gmra.mrb[0].mxu0 %v1832
    %v1868 = vpop.f32.mrb[0].mxu0
    %v1869 = vadd.f32 %v1817, %v1868
    %v1870 = vpop.f32.mrb[0].mxu0
    %v1871 = vpop.f32.mrb[0].mxu0
    %v1872 = vadd.f32 %v1817, %v1871
    %v1873 = vpop.f32.mrb[0].mxu0
    %1874 = vdwg.mxu0
    %v1875 = vmul.f32 %v1869, %v1869
    %v1876 = vmul.f32 %v1872, %v1872
    %v1877 = vmul.f32 %v1869, %v1875
    %v1878 = vmul.f32 %v1872, %v1876
    %v1879 = vmul.f32 %v1877, 0.044715
    %v1880 = vmul.f32 %v1878, 0.044715
    %v1881 = vadd.f32 %v1869, %v1879
    %v1882 = vadd.f32 %v1872, %v1880
    %v1883 = vmul.f32 %v1881, 0.7978846
    %v1884 = vmul.f32 %v1882, 0.7978846
    %v1885 = vtanh.pop %v1883
    %v1886 = vtanh.pop %v1884
    %v1887 = vadd.f32 %v1885, 1.0
    %v1888 = vadd.f32 %v1886, 1.0
    %v1889 = vmul.f32 %v1887, 0.5
    %v1890 = vmul.f32 %v1888, 0.5
    %v1891 = vmul.f32 %v1869, %v1889
    %v1892 = vmul.f32 %v1872, %v1890
    %v1893 = vpack.c.bf16 %v1892, %v1891
    %s1894 = scalar_lea.vmem %s12, 32
    %v1895 = vld [vmem:[%s1894] sm:$0xf]
    %v1896 = vld [vmem:[%s1894 + $0x4] sm:$0xf]
    %v1897 = vld [vmem:[%s1894 + $0x8] sm:$0xf]
    %v1898 = vld [vmem:[%s1894 + $0xc] sm:$0xf]
    %v1899 = vld [vmem:[%s1894 + $0x10] sm:$0xf]
    %v1900 = vld [vmem:[%s1894 + $0x14] sm:$0xf]
    %v1901 = vld [vmem:[%s1894 + $0x18] sm:$0xf]
    %v1902 = vld [vmem:[%s1894 + $0x1c] sm:$0xf]
    %s1903 = scalar_lea.vmem [#allocation14], 1
    %v1904 = vld [vmem:[%s1903] sm:$0x1]
    %v1906 = vlaneseq
    %v1907 = vshrl.u32 %v1906, 7
    %v1908 = vsub.s32 0, %v1907
    %v1909 = vrot.slane %v1904, %v1908
    %v1919 = vunpack.c.l.b16 %v1895
    %v1920 = vunpack.c.l.b16 %v1896
    %v1921 = vunpack.c.l.b16 %v1897
    %v1922 = vunpack.c.l.b16 %v1898
    %v1923 = vunpack.c.l.b16 %v1899
    %v1924 = vunpack.c.l.b16 %v1900
    %v1925 = vunpack.c.l.b16 %v1901
    %v1926 = vunpack.c.l.b16 %v1902
    %v1927 = vpack.c.b16 %v1920, %v1919
    %v1928 = vpack.c.b16 %v1922, %v1921
    %v1929 = vpack.c.b16 %v1924, %v1923
    %v1930 = vpack.c.b16 %v1926, %v1925
    %v1936 = vsel %vm1037, %v1893, 0
    %1938 = vmatprep.subr.bf16.mxu0 0
    %1939 = vmatpush1.bf16.msra.mxu0 %v1927
    %1940 = vmatprep.subr.bf16.mxu0 0
    %1941 = vmatpush1.bf16.msra.mxu0 %v1928
    %1942 = vmatprep.subr.bf16.mxu0 0
    %1943 = vmatpush1.bf16.msra.mxu0 %v1929
    %1944 = vmatprep.subr.bf16.mxu0 0
    %1945 = vmatpush1.bf16.msra.mxu0 %v1930
    %1946 = vmatprep.subr.bf16.mxu0 0
    %1947 = vmatpush1.bf16.msra.mxu0 0
    %1948 = vmatprep.subr.bf16.mxu0 0
    %1949 = vmatpush1.bf16.msra.mxu0 0
    %1950 = vmatprep.subr.bf16.mxu0 0
    %1951 = vmatpush1.bf16.msra.mxu0 0
    %1952 = vmatprep.subr.bf16.mxu0 0
    %1953 = vmatpush1.bf16.msra.mxu0 0
    %1954 = vmatprep.subr.bf16.mxu0 0
    %1955 = vmatpush1.bf16.msra.mxu0 0
    %1956 = vmatprep.subr.bf16.mxu0 0
    %1957 = vmatpush1.bf16.msra.mxu0 0
    %1958 = vmatprep.subr.bf16.mxu0 0
    %1959 = vmatpush1.bf16.msra.mxu0 0
    %1960 = vmatprep.subr.bf16.mxu0 0
    %1961 = vmatpush1.bf16.msra.mxu0 0
    %1962 = vmatprep.subr.bf16.mxu0 0
    %1963 = vmatpush1.bf16.msra.mxu0 0
    %1964 = vmatprep.subr.bf16.mxu0 0
    %1965 = vmatpush1.bf16.msra.mxu0 0
    %1966 = vmatprep.subr.bf16.mxu0 0
    %1967 = vmatpush1.bf16.msra.mxu0 0
    %1968 = vmatprep.subr.bf16.mxu0 0
    %1969 = vmatpush1.bf16.msra.mxu0 0
    %1970 = vmatprep.mubr.bf16.mxu0 0
    %1971 = vmatmul.mubr.bf16.gmra.mrb[0].mxu0 %v1936
    %v1972 = vpop.f32.mrb[0].mxu0
    %v1973 = vadd.f32 %v1909, %v1972
    %v1974 = vpop.f32.mrb[0].mxu0
    %v1975 = vpop.f32.mrb[0].mxu0
    %v1976 = vadd.f32 %v1909, %v1975
    %v1977 = vpop.f32.mrb[0].mxu0
    %1978 = vdwg.mxu0
    %v1979 = vadd.f32 %v1803, %v1973
    %v1980 = vadd.f32 %v1804, %v1976
    %s1981 = scalar_lea.vmem %s14, 1
    %v1982 = vld [vmem:[%s1981] sm:$0x1]
    %s1983 = scalar_lea.vmem %s15, 1
    %v1984 = vld [vmem:[%s1983] sm:$0x1]
    %v1985 = vsel %vm179, %v1979, 0.0
    %1986 = vadd.xlane.f32.xlu0 %v1985
    %v1987 = vpop.xlane.xlu0 %1986
    %v1988 = vsel %vm179, %v1980, 0.0
    %1989 = vadd.xlane.f32.xlu0 %v1988
    %v1990 = vpop.xlane.xlu0 %1989
    %v1991 = vmul.f32 %v1987, %v186
    %v1992 = vmul.f32 %v1990, %v186
    %v1993 = vsub.f32 %v1979, %v1991
    %v1994 = vsub.f32 %v1980, %v1992
    %v1995 = vmul.f32 %v1993, %v1993
    %v1996 = vmul.f32 %v1994, %v1994
    %v1997 = vsel %vm179, %v1995, 0.0
    %1998 = vadd.xlane.f32.xlu0 %v1997
    %v1999 = vpop.xlane.xlu0 %1998
    %v2000 = vsel %vm179, %v1996, 0.0
    %2001 = vadd.xlane.f32.xlu0 %v2000
    %v2002 = vpop.xlane.xlu0 %2001
    %v2003 = vmul.f32 %v1999, %v186
    %v2004 = vmul.f32 %v2002, %v186
    %v2005 = vadd.f32 %v2003, 1e-12
    %v2006 = vadd.f32 %v2004, 1e-12
    %v2007 = vrsqrt.pop %v2005
    %v2008 = vrsqrt.pop %v2006
    %v2009 = vmul.f32 %v1993, %v2007
    %v2010 = vmul.f32 %v1994, %v2008
    %v2012 = vlaneseq
    %v2013 = vshrl.u32 %v2012, 7
    %v2014 = vsub.s32 0, %v2013
    %v2015 = vrot.slane %v1982, %v2014
    %v2017 = vmul.f32 %v2009, %v2015
    %v2018 = vmul.f32 %v2010, %v2015
    %v2020 = vlaneseq
    %v2021 = vshrl.u32 %v2020, 7
    %v2022 = vsub.s32 0, %v2021
    %v2023 = vrot.slane %v1984, %v2022
    %v2025 = vadd.f32 %v2017, %v2023
    %v2026 = vadd.f32 %v2018, %v2023
    %v2027 = vpack.c.bf16 %v2026, %v2025
    %v2028 = vld [vmem:[%s16] sm:$0xf]
    %v2029 = vld [vmem:[%s16 + $0x4] sm:$0xf]
    %v2030 = vld [vmem:[%s16 + $0x8] sm:$0xf]
    %v2031 = vld [vmem:[%s16 + $0xc] sm:$0xf]
    %v2032 = vld [vmem:[%s17] sm:$0x1]
    %v2034 = vlaneseq
    %v2035 = vshrl.u32 %v2034, 7
    %v2036 = vsub.s32 0, %v2035
    %v2037 = vrot.slane %v2032, %v2036
    %v2043 = vunpack.c.l.b16 %v2028
    %v2044 = vunpack.c.l.b16 %v2029
    %v2045 = vunpack.c.l.b16 %v2030
    %v2046 = vunpack.c.l.b16 %v2031
    %v2047 = vpack.c.b16 %v2044, %v2043
    %v2048 = vpack.c.b16 %v2046, %v2045
    %v2052 = vsel %vm179, %v2027, 0
    %2054 = vmatprep.subr.bf16.mxu0 0
    %2055 = vmatpush1.bf16.msra.mxu0 %v2047
    %2056 = vmatprep.subr.bf16.mxu0 0
    %2057 = vmatpush1.bf16.msra.mxu0 %v2048
    %2058 = vmatprep.subr.bf16.mxu0 0
    %2059 = vmatpush1.bf16.msra.mxu0 0
    %2060 = vmatprep.subr.bf16.mxu0 0
    %2061 = vmatpush1.bf16.msra.mxu0 0
    %2062 = vmatprep.subr.bf16.mxu0 0
    %2063 = vmatpush1.bf16.msra.mxu0 0
    %2064 = vmatprep.subr.bf16.mxu0 0
    %2065 = vmatpush1.bf16.msra.mxu0 0
    %2066 = vmatprep.subr.bf16.mxu0 0
    %2067 = vmatpush1.bf16.msra.mxu0 0
    %2068 = vmatprep.subr.bf16.mxu0 0
    %2069 = vmatpush1.bf16.msra.mxu0 0
    %2070 = vmatprep.subr.bf16.mxu0 0
    %2071 = vmatpush1.bf16.msra.mxu0 0
    %2072 = vmatprep.subr.bf16.mxu0 0
    %2073 = vmatpush1.bf16.msra.mxu0 0
    %2074 = vmatprep.subr.bf16.mxu0 0
    %2075 = vmatpush1.bf16.msra.mxu0 0
    %2076 = vmatprep.subr.bf16.mxu0 0
    %2077 = vmatpush1.bf16.msra.mxu0 0
    %2078 = vmatprep.subr.bf16.mxu0 0
    %2079 = vmatpush1.bf16.msra.mxu0 0
    %2080 = vmatprep.subr.bf16.mxu0 0
    %2081 = vmatpush1.bf16.msra.mxu0 0
    %2082 = vmatprep.subr.bf16.mxu0 0
    %2083 = vmatpush1.bf16.msra.mxu0 0
    %2084 = vmatprep.subr.bf16.mxu0 0
    %2085 = vmatpush1.bf16.msra.mxu0 0
    %2086 = vmatprep.mubr.bf16.mxu0 0
    %2087 = vmatmul.mubr.bf16.gmra.mrb[0].mxu0 %v2052
    %v2088 = vpop.f32.mrb[0].mxu0
    %v2089 = vadd.f32 %v2037, %v2088
    %v2090 = vpop.f32.mrb[0].mxu0
    %v2091 = vpop.f32.mrb[0].mxu0
    %v2092 = vadd.f32 %v2037, %v2091
    %v2093 = vpop.f32.mrb[0].mxu0
    %2094 = vdwg.mxu0
    %2095 = vst [vmem:[#allocation16] sm:$0xff] %v2089
    %2096 = vst [vmem:[#allocation16 + $0x8] sm:$0xff] %v2092
    %v2098 = vunpack.c.l.b16 %v2027
    %v2099 = vunpack.c.h.b16 %v2027
    %v2100 = vld [vmem:[%s18] sm:$0xf]
    %v2101 = vld [vmem:[%s18 + $0x4] sm:$0xf]
    %v2102 = vld [vmem:[%s18 + $0x8] sm:$0xf]
    %v2103 = vld [vmem:[%s18 + $0xc] sm:$0xf]
    %v2104 = vld [vmem:[%s19] sm:$0x1]
    %v2106 = vlaneseq
    %v2107 = vshrl.u32 %v2106, 7
    %v2108 = vsub.s32 0, %v2107
    %v2109 = vrot.slane %v2104, %v2108
    %v2111 = vpack.c.b16 %v2098, %v2098
    %v2112 = vpack.c.b16 %v2099, %v2099
    %v2113 = vunpack.c.l.b16 %v2111
    %v2114 = vunpack.c.l.b16 %v2112
    %v2115 = vrot.slane %v2114, 7
    %vm2116 = vcmask 1041409
    %v2117 = vsel %vm2116, %v2115, %v2113
    %v2118 = vpack.c.b16 %v2117, %v2117
    %v2123 = vunpack.c.l.b16 %v2100
    %v2124 = vunpack.c.l.b16 %v2101
    %v2125 = vunpack.c.l.b16 %v2102
    %v2126 = vunpack.c.l.b16 %v2103
    %v2127 = vpack.c.b16 %v2124, %v2123
    %v2128 = vpack.c.b16 %v2126, %v2125
    %v2132 = vsel %vm179, %v2118, 0
    %2134 = vmatprep.subr.bf16.mxu0 0
    %2135 = vmatpush1.bf16.msra.mxu0 %v2127
    %2136 = vmatprep.subr.bf16.mxu0 0
    %2137 = vmatpush1.bf16.msra.mxu0 %v2128
    %2138 = vmatprep.subr.bf16.mxu0 0
    %2139 = vmatpush1.bf16.msra.mxu0 0
    %2140 = vmatprep.subr.bf16.mxu0 0
    %2141 = vmatpush1.bf16.msra.mxu0 0
    %2142 = vmatprep.subr.bf16.mxu0 0
    %2143 = vmatpush1.bf16.msra.mxu0 0
    %2144 = vmatprep.subr.bf16.mxu0 0
    %2145 = vmatpush1.bf16.msra.mxu0 0
    %2146 = vmatprep.subr.bf16.mxu0 0
    %2147 = vmatpush1.bf16.msra.mxu0 0
    %2148 = vmatprep.subr.bf16.mxu0 0
    %2149 = vmatpush1.bf16.msra.mxu0 0
    %2150 = vmatprep.subr.bf16.mxu0 0
    %2151 = vmatpush1.bf16.msra.mxu0 0
    %2152 = vmatprep.subr.bf16.mxu0 0
    %2153 = vmatpush1.bf16.msra.mxu0 0
    %2154 = vmatprep.subr.bf16.mxu0 0
    %2155 = vmatpush1.bf16.msra.mxu0 0
    %2156 = vmatprep.subr.bf16.mxu0 0
    %2157 = vmatpush1.bf16.msra.mxu0 0
    %2158 = vmatprep.subr.bf16.mxu0 0
    %2159 = vmatpush1.bf16.msra.mxu0 0
    %2160 = vmatprep.subr.bf16.mxu0 0
    %2161 = vmatpush1.bf16.msra.mxu0 0
    %2162 = vmatprep.subr.bf16.mxu0 0
    %2163 = vmatpush1.bf16.msra.mxu0 0
    %2164 = vmatprep.subr.bf16.mxu0 0
    %2165 = vmatpush1.bf16.msra.mxu0 0
    %2166 = vmatprep.mubr.bf16.mxu0 0
    %2167 = vmatmul.mubr.bf16.gmra.mrb[0].mxu0 %v2132
    %v2168 = vpop.f32.mrb[0].mxu0
    %v2169 = vadd.f32 %v2109, %v2168
    %v2170 = vpop.f32.mrb[0].mxu0
    %v2171 = vpop.f32.mrb[0].mxu0
    %v2172 = vpop.f32.mrb[0].mxu0
    %2173 = vdwg.mxu0
    %vm2174 = vcmask 9216
    %2175 = vst.msk [vmem:[#allocation17] sm:$0x3] %vm2174, %v2169
    // Predicated region
    $region114: #{tpu_custom_call.1} parent=1 // pred_check
      _
    $region115: #{tpu_custom_call.1} parent=1 // pred_check_branch
      %2177 = sbr.rel (0) target = $region117
    $region116: #{tpu_custom_call.1} parent=1 // pred_region
      %s2179 = ssub.s32 256, 256
      %2180 = vsyncadd [#allocation4], %s2179
      %s2181 = sshll.u32 [#allocation16], 4
      %s2182 = int_to_ptr.vmem [resolvable:$true] %s2181
      %2187 = dma.vmem_to_hbm [thread:$0]  %s2182, 256, %s20, [#allocation4], 128, 128, 8
    $region117: #{tpu_custom_call.1} parent=1 // pred_fallthru
      _
    // Predicated region
    $region118: #{tpu_custom_call.1} parent=1 // pred_check
      _
    $region119: #{tpu_custom_call.1} parent=1 // pred_check_branch
      %2189 = sbr.rel (0) target = $region121
    $region120: #{tpu_custom_call.1} parent=1 // pred_region
      %s2191 = ssub.s32 32, 32
      %2192 = vsyncadd [#allocation18], %s2191
      %s2194 = sshll.u32 [#allocation17], 4
      %s2195 = int_to_ptr.vmem [resolvable:$true] %s2194
      %2197 = dma.vmem_to_hbm [thread:$0]  %s2195, 32, %s21, [#allocation18]
    $region121: #{tpu_custom_call.1} parent=1 // pred_fallthru
      _
    // Predicated region
    $region122: #{tpu_custom_call.1} parent=1 // pred_check
      _
    $region123: #{tpu_custom_call.1} parent=1 // pred_check_branch
      %2199 = sbr.rel (0) target = $region125
    $region124: #{tpu_custom_call.1} parent=1 // pred_region
      %2200 = dma.done [#allocation4], 256
    $region125: #{tpu_custom_call.1} parent=1 // pred_fallthru
      _
    // Predicated region
    $region126: #{tpu_custom_call.1} parent=1 // pred_check
      _
    $region127: #{tpu_custom_call.1} parent=1 // pred_check_branch
      %2202 = sbr.rel (0) target = $region129
    $region128: #{tpu_custom_call.1} parent=1 // pred_region
      %2203 = dma.done [#allocation18], 32
    $region129: #{tpu_custom_call.1} parent=1 // pred_fallthru
      _
    %2204 = vsyncpa [#allocation3], 1
    %2205 = vsyncpa [#allocation6], 1
    %2206 = vsyncpa [#allocation9], 1
    %2207 = vsyncpa [#allocation12], 1
    %2208 = vsyncpa [#allocation15], 1
    %2209 = vsyncpa [#allocation4], 1
    %2210 = vsyncpa [#allocation18], 1

</llo_original>
